<compile_context>
chip_gen: v7x
topology: tpu7x:2x2x1
jax: 0.10.0
libtpu: 0.0.40
codegen_flags: <defaults>
</compile_context>

<pallas_src>
import functools

import jax
import jax.numpy as jnp
from jax.experimental import pallas as pl
from jax.experimental.pallas import tpu as pltpu

EPS = 1e-5


# ---------------------------- Pallas kernel ----------------------------

def _residual_unit_kernel(x_ref, mask_ref, w1_ref, b1_ref, wdw_ref, bdw_ref,
                          w2_ref, b2_ref, o_ref, *, W):
    Rt = x_ref.shape[0]                                     # rows in this block (whole images)

    x = x_ref[...]                                          # (Rt, Cp) f32

    # ---- expand_conv: 1x1 conv + folded BN + hardswish (MXU) ----
    y = jnp.dot(x.astype(w1_ref.dtype), w1_ref[...],
                preferred_element_type=jnp.float32) + b1_ref[...]
    y = y * jnp.clip(y + 3.0, 0.0, 6.0) * (1.0 / 6.0)       # (Rt, Mp) f32

    # ---- RepVGG depthwise 3x3 (taps folded in glue) via XLU rolls + border masks ----
    wdw = wdw_ref[...]                                      # (9, Mp)  tap-major (ky*3 + kx)
    masks = mask_ref[...]                                   # (Rt, 9)  1.0 where the tap is in-bounds
    acc = y * wdw[4] + bdw_ref[...]                         # center tap + folded bias (no broadcast_to)
    for dy in (-1, 0, 1):
        for dx in (-1, 0, 1):
            if dy == 0 and dx == 0:
                continue
            t = (dy + 1) * 3 + (dx + 1)
            s = dy * W + dx                                 # flattened-row offset of this tap
            nb = pltpu.roll(y, (-s) % Rt, axis=0)           # nb[r] = y[r + s]; wraps are masked off
            acc = acc + (nb * wdw[t]) * masks[:, t:t + 1]

    # ResidualUnit overrides the RepVGG nonlinearity with hswish (act != 'relu' path)
    acc = acc * jnp.clip(acc + 3.0, 0.0, 6.0) * (1.0 / 6.0)

    # ---- linear_conv: 1x1 conv + folded BN, no activation (MXU) ----
    z = jnp.dot(acc.astype(w2_ref.dtype), w2_ref[...],
                preferred_element_type=jnp.float32) + b2_ref[...]

    # ---- shortcut (f32), lane-dense store ----
    o_ref[...] = (x + z).astype(o_ref.dtype)


# ---------------------------- wrapper / glue ----------------------------

def _round_up(n, m):
    return ((n + m - 1) // m) * m


def _pick_images_per_block(batch, hw, target_rows=1024, min_grid=2):
    """Largest divisor of `batch` keeping the block <= target_rows rows and, when
    possible, >= min_grid grid steps (keeps both v7x TensorCores busy)."""
    divs = [d for d in range(1, batch + 1)
            if batch % d == 0 and d * hw <= max(target_rows, hw)]
    pref = [d for d in divs if batch // d >= min_grid]
    return max(pref) if pref else (max(divs) if divs else 1)


def residual_unit_pallas(x_nhwc, w1, b1, wdw, bdw, w2, b2, *,
                         matmul_dtype=jnp.bfloat16):
    B, H, W, Cin = x_nhwc.shape
    Cmid = w1.shape[1]
    Cout = w2.shape[1]
    assert Cin == Cout, "shortcut path requires in_channels == out_channels (stride=1)"
    HW = H * W

    # Lane-dense channel padding (pad weights/biases with zeros -> padded lanes stay 0).
    Cp = _round_up(Cout, 128)
    Mp = _round_up(Cmid, 128)
    x_rows = jnp.pad(x_nhwc.reshape(B * HW, Cin), ((0, 0), (0, Cp - Cin)))
    w1p = jnp.pad(w1, ((0, Cp - Cin), (0, Mp - Cmid))).astype(matmul_dtype)
    b1p = jnp.pad(b1, ((0, 0), (0, Mp - Cmid)))
    wdwp = jnp.pad(wdw, ((0, 0), (0, Mp - Cmid)))
    bdwp = jnp.pad(bdw, ((0, 0), (0, Mp - Cmid)))
    w2p = jnp.pad(w2, ((0, Mp - Cmid), (0, Cp - Cout))).astype(matmul_dtype)
    b2p = jnp.pad(b2, ((0, 0), (0, Cp - Cout)))

    # Whole images per grid step (rolls never leak across images thanks to the masks).
    ipb = _pick_images_per_block(B, HW)
    Rt = ipb * HW
    if Rt % 8 != 0:                      # fall back to block == whole array (always legal)
        ipb, Rt = B, B * HW
    grid = B // ipb

    # Per-tap in-bounds masks, built once in glue (1.0 where the 3x3 neighbour exists).
    r = jnp.arange(Rt)
    h = (r // W) % H
    w = r % W
    hv = {-1: h >= 1, 0: jnp.ones_like(h, dtype=bool), 1: h <= H - 2}
    wv = {-1: w >= 1, 0: jnp.ones_like(w, dtype=bool), 1: w <= W - 2}
    tap_mask = jnp.stack(
        [(hv[dy] & wv[dx]).astype(jnp.float32)
         for dy in (-1, 0, 1) for dx in (-1, 0, 1)], axis=1)          # (Rt, 9)

    kernel = functools.partial(_residual_unit_kernel, W=W)
    out_rows = pl.pallas_call(
        kernel,
        out_shape=jax.ShapeDtypeStruct((B * HW, Cp), x_nhwc.dtype),
        grid_spec=pltpu.PrefetchScalarGridSpec(
            num_scalar_prefetch=0,
            grid=(grid,),
            in_specs=[
                pl.BlockSpec((Rt, Cp), lambda i: (i, 0)),   # x rows (lane-dense)
                pl.BlockSpec((Rt, 9), lambda i: (0, 0)),    # per-tap border masks
                pl.BlockSpec((Cp, Mp), lambda i: (0, 0)),   # expand weights
                pl.BlockSpec((1, Mp), lambda i: (0, 0)),    # expand bias (BN folded)
                pl.BlockSpec((9, Mp), lambda i: (0, 0)),    # folded depthwise taps
                pl.BlockSpec((1, Mp), lambda i: (0, 0)),    # folded depthwise bias
                pl.BlockSpec((Mp, Cp), lambda i: (0, 0)),   # linear weights
                pl.BlockSpec((1, Cp), lambda i: (0, 0)),    # linear bias (BN folded)
            ],
            out_specs=pl.BlockSpec((Rt, Cp), lambda i: (i, 0)),
        ),
        compiler_params=pltpu.CompilerParams(
            dimension_semantics=("parallel",),
            vmem_limit_bytes=48 * 1024 * 1024,
        ),
    )(x_rows, tap_mask, w1p, b1p, wdwp, bdwp, w2p, b2p)

    return out_rows[:, :Cout].reshape(B, H, W, Cout)


# ---------------- parameter construction (glue, plain JAX) ----------------

def make_params(key, Cin, Cmid, Cout):
    keys = iter(jax.random.split(key, 40))

    def nrm(shape, scale=0.1):
        return scale * jax.random.normal(next(keys), shape, jnp.float32)

    def pos(shape):
        return 0.5 + jax.random.uniform(next(keys), shape, dtype=jnp.float32)

    def bn(c):  # (gamma, beta, running_mean, running_var)
        return (pos((c,)), nrm((c,)), nrm((c,)), pos((c,)))

    p = {
        "w_exp": nrm((Cmid, Cin, 1, 1)), "b_exp": nrm((Cmid,)), "bn1": bn(Cmid),
        "w_dw": nrm((Cmid, 1, 3, 3)), "bnD": bn(Cmid),          # rbr_dense (bias=False)
        "w_1x1": nrm((Cmid, 1, 1, 1)), "bnP": bn(Cmid),         # rbr_1x1  (bias=False)
        "bnI": bn(Cmid),                                        # rbr_identity BN
        "w_lin": nrm((Cout, Cmid, 1, 1)), "b_lin": nrm((Cout,)), "bn2": bn(Cout),
    }
    return p


def fold_params(p):
    def scale(bnp):
        g, b, m, v = bnp
        s = g / jnp.sqrt(v + EPS)
        return s, b - m * s

    s1, sh1 = scale(p["bn1"])
    w1 = (p["w_exp"][:, :, 0, 0] * s1[:, None]).T              # (Cin, Cmid)
    b1 = (p["b_exp"] * s1 + sh1)[None, :]                      # (1, Cmid)

    sD, bD = scale(p["bnD"])
    wD = p["w_dw"][:, 0, :, :] * sD[:, None, None]             # (Cmid, 3, 3)
    sP, bP = scale(p["bnP"])
    wP = p["w_1x1"][:, 0, 0, 0] * sP                           # (Cmid,)
    sI, bI = scale(p["bnI"])

    wdw = jnp.transpose(wD, (1, 2, 0)).reshape(9, -1)          # tap-major (ky*3+kx, C)
    wdw = wdw.at[4].add(wP + sI)                               # fold 1x1 + identity into center tap
    bdw = (bD + bP + bI)[None, :]

    s2, sh2 = scale(p["bn2"])
    w2 = (p["w_lin"][:, :, 0, 0] * s2[:, None]).T              # (Cmid, Cout)
    b2 = (p["b_lin"] * s2 + sh2)[None, :]
    return w1, b1, wdw, bdw, w2, b2


# ---------------- pure-JAX reference (unfolded, branch by branch) ----------------

def ref_residual_unit(x_nhwc, p):
    def bn(t, bnp):
        g, b, m, v = bnp
        return (t - m) * (g / jnp.sqrt(v + EPS)) + b

    def hsw(t):
        return t * jnp.clip(t + 3.0, 0.0, 6.0) / 6.0

    H, W = x_nhwc.shape[1:3]
    y = jnp.einsum("bhwi,oi->bhwo", x_nhwc, p["w_exp"][:, :, 0, 0]) + p["b_exp"]
    y = hsw(bn(y, p["bn1"]))

    yp = jnp.pad(y, ((0, 0), (1, 1), (1, 1), (0, 0)))
    dense = sum(yp[:, ky:ky + H, kx:kx + W, :] * p["w_dw"][:, 0, ky, kx]
                for ky in range(3) for kx in range(3))
    dense = bn(dense, p["bnD"])
    p1 = bn(y * p["w_1x1"][:, 0, 0, 0], p["bnP"])
    idb = bn(y, p["bnI"])
    s = hsw(dense + p1 + idb)

    z = jnp.einsum("bhwm,om->bhwo", s, p["w_lin"][:, :, 0, 0]) + p["b_lin"]
    z = bn(z, p["bn2"])
    return x_nhwc + z


if __name__ == "__main__":
    key = jax.random.PRNGKey(0)
    kx, kp = jax.random.split(key)

    B, Cin, H, W = 2, 8, 8, 8
    Cmid, Cout = 16, 8                       # stride=1, Cin==Cout -> shortcut path

    x_nchw = jax.random.normal(kx, (B, Cin, H, W), jnp.float32)   # PyTorch-style input
    x_nhwc = jnp.transpose(x_nchw, (0, 2, 3, 1))                  # kernel layout

    params = make_params(kp, Cin, Cmid, Cout)
    w1, b1, wdw, bdw, w2, b2 = fold_params(params)

    ref = ref_residual_unit(x_nhwc, params)

    # Exact path (f32 matmul weights): tight check against the unfolded f32 reference.
    out_f32 = residual_unit_pallas(x_nhwc, w1, b1, wdw, bdw, w2, b2,
                                   matmul_dtype=jnp.float32)
    out_f32 = jax.block_until_ready(out_f32)
    assert out_f32.shape == (B, H, W, Cout)
    assert jnp.allclose(out_f32, ref, rtol=1e-4, atol=1e-4), (
        float(jnp.max(jnp.abs(out_f32 - ref))))

    # Optimized path (bf16 MXU inputs, full-rate on v6e/v7x): looser tolerance covers
    # the expected bf16 rounding of matmul inputs (accumulation stays f32).
    out_bf16 = residual_unit_pallas(x_nhwc, w1, b1, wdw, bdw, w2, b2,
                                    matmul_dtype=jnp.bfloat16)
    out_bf16 = jax.block_until_ready(out_bf16)
    assert out_bf16.shape == (B, H, W, Cout)
    assert jnp.allclose(out_bf16, ref, rtol=5e-2, atol=5e-2), (
        float(jnp.max(jnp.abs(out_bf16 - ref))))

    print("KERNEL_OK")
</pallas_src>

<mosaic_0001>
module attributes {stable_mosaic.version = 11 : i64} {
  func.func @_residual_unit_kernel(%arg0: i32, %arg1: memref<64x128xf32, #tpu.memory_space<vmem>>, %arg2: memref<64x9xf32, #tpu.memory_space<vmem>>, %arg3: memref<128x128xf32, #tpu.memory_space<vmem>>, %arg4: memref<1x128xf32, #tpu.memory_space<vmem>>, %arg5: memref<9x128xf32, #tpu.memory_space<vmem>>, %arg6: memref<1x128xf32, #tpu.memory_space<vmem>>, %arg7: memref<128x128xf32, #tpu.memory_space<vmem>>, %arg8: memref<1x128xf32, #tpu.memory_space<vmem>>, %arg9: memref<64x128xf32, #tpu.memory_space<vmem>>) attributes {dimension_semantics = [#tpu.dimension_semantics<parallel>], iteration_bounds = array<i64: 2>, scalar_prefetch = 0 : i64, scratch_operands = 0 : i64, tpu.core_type = #tpu.core_type<tc>, window_params = [{transform_indices = @transform_0, window_bounds = array<i64: 64, 128>}, {pipeline_mode = #tpu.pipeline_mode<synchronous>, transform_indices = @transform_1, window_bounds = array<i64: 64, 9>}, {pipeline_mode = #tpu.pipeline_mode<synchronous>, transform_indices = @transform_2, window_bounds = array<i64: 128, 128>}, {pipeline_mode = #tpu.pipeline_mode<synchronous>, transform_indices = @transform_3, window_bounds = array<i64: 1, 128>}, {pipeline_mode = #tpu.pipeline_mode<synchronous>, transform_indices = @transform_4, window_bounds = array<i64: 9, 128>}, {pipeline_mode = #tpu.pipeline_mode<synchronous>, transform_indices = @transform_5, window_bounds = array<i64: 1, 128>}, {pipeline_mode = #tpu.pipeline_mode<synchronous>, transform_indices = @transform_6, window_bounds = array<i64: 128, 128>}, {pipeline_mode = #tpu.pipeline_mode<synchronous>, transform_indices = @transform_7, window_bounds = array<i64: 1, 128>}, {transform_indices = @transform_8, window_bounds = array<i64: 64, 128>}]} {
    %c0 = arith.constant 0 : index
    %c0_0 = arith.constant 0 : index
    %0 = vector.load %arg1[%c0, %c0_0] : memref<64x128xf32, #tpu.memory_space<vmem>>, vector<64x128xf32>
    %c0_1 = arith.constant 0 : index
    %c0_2 = arith.constant 0 : index
    %1 = vector.load %arg3[%c0_1, %c0_2] : memref<128x128xf32, #tpu.memory_space<vmem>>, vector<128x128xf32>
    %cst = arith.constant dense<0.000000e+00> : vector<64x128xf32>
    %2 = tpu.matmul %0, %1, %cst {dimension_numbers = #tpu.dot_dimension_numbers<[1], [0], [0], [1], [0, 0, 1, 1], [], []>} : vector<64x128xf32>, vector<128x128xf32>, vector<64x128xf32> -> vector<64x128xf32>
    %c0_3 = arith.constant 0 : index
    %c0_4 = arith.constant 0 : index
    %3 = vector.load %arg4[%c0_3, %c0_4] : memref<1x128xf32, #tpu.memory_space<vmem>>, vector<1x128xf32>
    %4 = vector.broadcast %3 : vector<1x128xf32> to vector<64x128xf32>
    %5 = arith.addf %2, %4 : vector<64x128xf32>
    %cst_5 = arith.constant 3.000000e+00 : f32
    %6 = vector.broadcast %cst_5 : f32 to vector<64x128xf32>
    %7 = arith.addf %5, %6 : vector<64x128xf32>
    %cst_6 = arith.constant 0.000000e+00 : f32
    %cst_7 = arith.constant 6.000000e+00 : f32
    %8 = vector.broadcast %cst_6 : f32 to vector<64x128xf32>
    %9 = arith.maximumf %8, %7 : vector<64x128xf32>
    %10 = vector.broadcast %cst_7 : f32 to vector<64x128xf32>
    %11 = arith.minimumf %10, %9 : vector<64x128xf32>
    %12 = arith.mulf %5, %11 : vector<64x128xf32>
    %cst_8 = arith.constant 0.166666672 : f32
    %13 = vector.broadcast %cst_8 : f32 to vector<64x128xf32>
    %14 = arith.mulf %12, %13 : vector<64x128xf32>
    %c0_9 = arith.constant 0 : index
    %c0_10 = arith.constant 0 : index
    %15 = vector.load %arg5[%c0_9, %c0_10] : memref<9x128xf32, #tpu.memory_space<vmem>>, vector<9x128xf32>
    %c0_11 = arith.constant 0 : index
    %c0_12 = arith.constant 0 : index
    %16 = vector.load %arg2[%c0_11, %c0_12] : memref<64x9xf32, #tpu.memory_space<vmem>>, vector<64x9xf32>
    %17 = vector.extract_strided_slice %15 {offsets = [4, 0], sizes = [1, 128], strides = [1, 1]} : vector<9x128xf32> to vector<1x128xf32>
    %18 = vector.shape_cast %17 : vector<1x128xf32> to vector<128xf32>
    %19 = vector.shape_cast %18 : vector<128xf32> to vector<1x128xf32>
    %20 = vector.broadcast %19 : vector<1x128xf32> to vector<64x128xf32>
    %21 = arith.mulf %14, %20 : vector<64x128xf32>
    %c0_13 = arith.constant 0 : index
    %c0_14 = arith.constant 0 : index
    %22 = vector.load %arg6[%c0_13, %c0_14] : memref<1x128xf32, #tpu.memory_space<vmem>>, vector<1x128xf32>
    %23 = vector.broadcast %22 : vector<1x128xf32> to vector<64x128xf32>
    %24 = arith.addf %21, %23 : vector<64x128xf32>
    %c9_i32 = arith.constant 9 : i32
    %25 = tpu.dynamic_rotate %14 by %c9_i32 dim 0 : vector<64x128xf32>, i32 -> vector<64x128xf32>
    %26 = vector.extract_strided_slice %15 {offsets = [0, 0], sizes = [1, 128], strides = [1, 1]} : vector<9x128xf32> to vector<1x128xf32>
    %27 = vector.shape_cast %26 : vector<1x128xf32> to vector<128xf32>
    %28 = vector.shape_cast %27 : vector<128xf32> to vector<1x128xf32>
    %29 = vector.broadcast %28 : vector<1x128xf32> to vector<64x128xf32>
    %30 = arith.mulf %25, %29 : vector<64x128xf32>
    %31 = vector.extract_strided_slice %16 {offsets = [0, 0], sizes = [64, 1], strides = [1, 1]} : vector<64x9xf32> to vector<64x1xf32>
    %32 = vector.broadcast %31 : vector<64x1xf32> to vector<64x128xf32>
    %33 = arith.mulf %30, %32 : vector<64x128xf32>
    %34 = arith.addf %24, %33 : vector<64x128xf32>
    %c8_i32 = arith.constant 8 : i32
    %35 = tpu.dynamic_rotate %14 by %c8_i32 dim 0 : vector<64x128xf32>, i32 -> vector<64x128xf32>
    %36 = vector.extract_strided_slice %15 {offsets = [1, 0], sizes = [1, 128], strides = [1, 1]} : vector<9x128xf32> to vector<1x128xf32>
    %37 = vector.shape_cast %36 : vector<1x128xf32> to vector<128xf32>
    %38 = vector.shape_cast %37 : vector<128xf32> to vector<1x128xf32>
    %39 = vector.broadcast %38 : vector<1x128xf32> to vector<64x128xf32>
    %40 = arith.mulf %35, %39 : vector<64x128xf32>
    %41 = vector.extract_strided_slice %16 {offsets = [0, 1], sizes = [64, 1], strides = [1, 1]} : vector<64x9xf32> to vector<64x1xf32>
    %42 = vector.broadcast %41 : vector<64x1xf32> to vector<64x128xf32>
    %43 = arith.mulf %40, %42 : vector<64x128xf32>
    %44 = arith.addf %34, %43 : vector<64x128xf32>
    %c7_i32 = arith.constant 7 : i32
    %45 = tpu.dynamic_rotate %14 by %c7_i32 dim 0 : vector<64x128xf32>, i32 -> vector<64x128xf32>
    %46 = vector.extract_strided_slice %15 {offsets = [2, 0], sizes = [1, 128], strides = [1, 1]} : vector<9x128xf32> to vector<1x128xf32>
    %47 = vector.shape_cast %46 : vector<1x128xf32> to vector<128xf32>
    %48 = vector.shape_cast %47 : vector<128xf32> to vector<1x128xf32>
    %49 = vector.broadcast %48 : vector<1x128xf32> to vector<64x128xf32>
    %50 = arith.mulf %45, %49 : vector<64x128xf32>
    %51 = vector.extract_strided_slice %16 {offsets = [0, 2], sizes = [64, 1], strides = [1, 1]} : vector<64x9xf32> to vector<64x1xf32>
    %52 = vector.broadcast %51 : vector<64x1xf32> to vector<64x128xf32>
    %53 = arith.mulf %50, %52 : vector<64x128xf32>
    %54 = arith.addf %44, %53 : vector<64x128xf32>
    %c1_i32 = arith.constant 1 : i32
    %55 = tpu.dynamic_rotate %14 by %c1_i32 dim 0 : vector<64x128xf32>, i32 -> vector<64x128xf32>
    %56 = vector.extract_strided_slice %15 {offsets = [3, 0], sizes = [1, 128], strides = [1, 1]} : vector<9x128xf32> to vector<1x128xf32>
    %57 = vector.shape_cast %56 : vector<1x128xf32> to vector<128xf32>
    %58 = vector.shape_cast %57 : vector<128xf32> to vector<1x128xf32>
    %59 = vector.broadcast %58 : vector<1x128xf32> to vector<64x128xf32>
    %60 = arith.mulf %55, %59 : vector<64x128xf32>
    %61 = vector.extract_strided_slice %16 {offsets = [0, 3], sizes = [64, 1], strides = [1, 1]} : vector<64x9xf32> to vector<64x1xf32>
    %62 = vector.broadcast %61 : vector<64x1xf32> to vector<64x128xf32>
    %63 = arith.mulf %60, %62 : vector<64x128xf32>
    %64 = arith.addf %54, %63 : vector<64x128xf32>
    %c63_i32 = arith.constant 63 : i32
    %65 = tpu.dynamic_rotate %14 by %c63_i32 dim 0 : vector<64x128xf32>, i32 -> vector<64x128xf32>
    %66 = vector.extract_strided_slice %15 {offsets = [5, 0], sizes = [1, 128], strides = [1, 1]} : vector<9x128xf32> to vector<1x128xf32>
    %67 = vector.shape_cast %66 : vector<1x128xf32> to vector<128xf32>
    %68 = vector.shape_cast %67 : vector<128xf32> to vector<1x128xf32>
    %69 = vector.broadcast %68 : vector<1x128xf32> to vector<64x128xf32>
    %70 = arith.mulf %65, %69 : vector<64x128xf32>
    %71 = vector.extract_strided_slice %16 {offsets = [0, 5], sizes = [64, 1], strides = [1, 1]} : vector<64x9xf32> to vector<64x1xf32>
    %72 = vector.broadcast %71 : vector<64x1xf32> to vector<64x128xf32>
    %73 = arith.mulf %70, %72 : vector<64x128xf32>
    %74 = arith.addf %64, %73 : vector<64x128xf32>
    %c57_i32 = arith.constant 57 : i32
    %75 = tpu.dynamic_rotate %14 by %c57_i32 dim 0 : vector<64x128xf32>, i32 -> vector<64x128xf32>
    %76 = vector.extract_strided_slice %15 {offsets = [6, 0], sizes = [1, 128], strides = [1, 1]} : vector<9x128xf32> to vector<1x128xf32>
    %77 = vector.shape_cast %76 : vector<1x128xf32> to vector<128xf32>
    %78 = vector.shape_cast %77 : vector<128xf32> to vector<1x128xf32>
    %79 = vector.broadcast %78 : vector<1x128xf32> to vector<64x128xf32>
    %80 = arith.mulf %75, %79 : vector<64x128xf32>
    %81 = vector.extract_strided_slice %16 {offsets = [0, 6], sizes = [64, 1], strides = [1, 1]} : vector<64x9xf32> to vector<64x1xf32>
    %82 = vector.broadcast %81 : vector<64x1xf32> to vector<64x128xf32>
    %83 = arith.mulf %80, %82 : vector<64x128xf32>
    %84 = arith.addf %74, %83 : vector<64x128xf32>
    %c56_i32 = arith.constant 56 : i32
    %85 = tpu.dynamic_rotate %14 by %c56_i32 dim 0 : vector<64x128xf32>, i32 -> vector<64x128xf32>
    %86 = vector.extract_strided_slice %15 {offsets = [7, 0], sizes = [1, 128], strides = [1, 1]} : vector<9x128xf32> to vector<1x128xf32>
    %87 = vector.shape_cast %86 : vector<1x128xf32> to vector<128xf32>
    %88 = vector.shape_cast %87 : vector<128xf32> to vector<1x128xf32>
    %89 = vector.broadcast %88 : vector<1x128xf32> to vector<64x128xf32>
    %90 = arith.mulf %85, %89 : vector<64x128xf32>
    %91 = vector.extract_strided_slice %16 {offsets = [0, 7], sizes = [64, 1], strides = [1, 1]} : vector<64x9xf32> to vector<64x1xf32>
    %92 = vector.broadcast %91 : vector<64x1xf32> to vector<64x128xf32>
    %93 = arith.mulf %90, %92 : vector<64x128xf32>
    %94 = arith.addf %84, %93 : vector<64x128xf32>
    %c55_i32 = arith.constant 55 : i32
    %95 = tpu.dynamic_rotate %14 by %c55_i32 dim 0 : vector<64x128xf32>, i32 -> vector<64x128xf32>
    %96 = vector.extract_strided_slice %15 {offsets = [8, 0], sizes = [1, 128], strides = [1, 1]} : vector<9x128xf32> to vector<1x128xf32>
    %97 = vector.shape_cast %96 : vector<1x128xf32> to vector<128xf32>
    %98 = vector.shape_cast %97 : vector<128xf32> to vector<1x128xf32>
    %99 = vector.broadcast %98 : vector<1x128xf32> to vector<64x128xf32>
    %100 = arith.mulf %95, %99 : vector<64x128xf32>
    %101 = vector.extract_strided_slice %16 {offsets = [0, 8], sizes = [64, 1], strides = [1, 1]} : vector<64x9xf32> to vector<64x1xf32>
    %102 = vector.broadcast %101 : vector<64x1xf32> to vector<64x128xf32>
    %103 = arith.mulf %100, %102 : vector<64x128xf32>
    %104 = arith.addf %94, %103 : vector<64x128xf32>
    %cst_15 = arith.constant 3.000000e+00 : f32
    %105 = vector.broadcast %cst_15 : f32 to vector<64x128xf32>
    %106 = arith.addf %104, %105 : vector<64x128xf32>
    %cst_16 = arith.constant 0.000000e+00 : f32
    %cst_17 = arith.constant 6.000000e+00 : f32
    %107 = vector.broadcast %cst_16 : f32 to vector<64x128xf32>
    %108 = arith.maximumf %107, %106 : vector<64x128xf32>
    %109 = vector.broadcast %cst_17 : f32 to vector<64x128xf32>
    %110 = arith.minimumf %109, %108 : vector<64x128xf32>
    %111 = arith.mulf %104, %110 : vector<64x128xf32>
    %cst_18 = arith.constant 0.166666672 : f32
    %112 = vector.broadcast %cst_18 : f32 to vector<64x128xf32>
    %113 = arith.mulf %111, %112 : vector<64x128xf32>
    %c0_19 = arith.constant 0 : index
    %c0_20 = arith.constant 0 : index
    %114 = vector.load %arg7[%c0_19, %c0_20] : memref<128x128xf32, #tpu.memory_space<vmem>>, vector<128x128xf32>
    %cst_21 = arith.constant dense<0.000000e+00> : vector<64x128xf32>
    %115 = tpu.matmul %113, %114, %cst_21 {dimension_numbers = #tpu.dot_dimension_numbers<[1], [0], [0], [1], [0, 0, 1, 1], [], []>} : vector<64x128xf32>, vector<128x128xf32>, vector<64x128xf32> -> vector<64x128xf32>
    %c0_22 = arith.constant 0 : index
    %c0_23 = arith.constant 0 : index
    %116 = vector.load %arg8[%c0_22, %c0_23] : memref<1x128xf32, #tpu.memory_space<vmem>>, vector<1x128xf32>
    %117 = vector.broadcast %116 : vector<1x128xf32> to vector<64x128xf32>
    %118 = arith.addf %115, %117 : vector<64x128xf32>
    %119 = arith.addf %0, %118 : vector<64x128xf32>
    %c0_24 = arith.constant 0 : index
    %c0_25 = arith.constant 0 : index
    %120 = vector.load %arg9[%c0_24, %c0_25] : memref<64x128xf32, #tpu.memory_space<vmem>>, vector<64x128xf32>
    tpu.vector_store %arg9[%c0_24, %c0_25], %119 {strides = array<i32>} : memref<64x128xf32, #tpu.memory_space<vmem>>, vector<64x128xf32>,
    return
  }
  func.func @transform_0(%arg0: i32) -> (i32, i32) {
    %c0_i32 = arith.constant 0 : i32
    %c0_i32_0 = arith.constant 0 : i32
    return %arg0, %c0_i32 : i32, i32
  }
  func.func @transform_1(%arg0: i32) -> (i32, i32) {
    %c0_i32 = arith.constant 0 : i32
    %c0_i32_0 = arith.constant 0 : i32
    %c0_i32_1 = arith.constant 0 : i32
    return %c0_i32, %c0_i32_0 : i32, i32
  }
  func.func @transform_2(%arg0: i32) -> (i32, i32) {
    %c0_i32 = arith.constant 0 : i32
    %c0_i32_0 = arith.constant 0 : i32
    %c0_i32_1 = arith.constant 0 : i32
    return %c0_i32, %c0_i32_0 : i32, i32
  }
  func.func @transform_3(%arg0: i32) -> (i32, i32) {
    %c0_i32 = arith.constant 0 : i32
    %c0_i32_0 = arith.constant 0 : i32
    %c0_i32_1 = arith.constant 0 : i32
    return %c0_i32, %c0_i32_0 : i32, i32
  }
  func.func @transform_4(%arg0: i32) -> (i32, i32) {
    %c0_i32 = arith.constant 0 : i32
    %c0_i32_0 = arith.constant 0 : i32
    %c0_i32_1 = arith.constant 0 : i32
    return %c0_i32, %c0_i32_0 : i32, i32
  }
  func.func @transform_5(%arg0: i32) -> (i32, i32) {
    %c0_i32 = arith.constant 0 : i32
    %c0_i32_0 = arith.constant 0 : i32
    %c0_i32_1 = arith.constant 0 : i32
    return %c0_i32, %c0_i32_0 : i32, i32
  }
  func.func @transform_6(%arg0: i32) -> (i32, i32) {
    %c0_i32 = arith.constant 0 : i32
    %c0_i32_0 = arith.constant 0 : i32
    %c0_i32_1 = arith.constant 0 : i32
    return %c0_i32, %c0_i32_0 : i32, i32
  }
  func.func @transform_7(%arg0: i32) -> (i32, i32) {
    %c0_i32 = arith.constant 0 : i32
    %c0_i32_0 = arith.constant 0 : i32
    %c0_i32_1 = arith.constant 0 : i32
    return %c0_i32, %c0_i32_0 : i32, i32
  }
  func.func @transform_8(%arg0: i32) -> (i32, i32) {
    %c0_i32 = arith.constant 0 : i32
    %c0_i32_0 = arith.constant 0 : i32
    return %arg0, %c0_i32 : i32, i32
  }
}

</mosaic_0001>

<llo_original>
// kernel: tpu_custom_call.1
$region0: #{tpu_custom_call.1}
  #allocation0 [shape = 'u32[]', space=smem, size = 0x4, offset = 0x4, fixed_abs, tag = 'smem constant byte address 0x4 - core index']
  #allocation1 [shape = 'u32[144,128]{1,0:T(1,128)}', space=vmem, size = 0x12000, scoped, tag = 'internal scratch']
  %s0 = inlined_call_operand.hbm [shape: f32[128,128], index: 0, kind: input, shape index: {}]
  %s1 = inlined_call_operand.vmem [shape: f32[64,9], index: 1, kind: input, shape index: {}]
  %s2 = inlined_call_operand.hbm [shape: f32[128,128], index: 2, kind: input, shape index: {}]
  %s3 = inlined_call_operand.vmem [shape: f32[1,128], index: 3, kind: input, shape index: {}]
  %s4 = inlined_call_operand.vmem [shape: f32[9,128], index: 4, kind: input, shape index: {}]
  %s5 = inlined_call_operand.vmem [shape: f32[1,128], index: 5, kind: input, shape index: {}]
  %s6 = inlined_call_operand.hbm [shape: f32[128,128], index: 6, kind: input, shape index: {}]
  %s7 = inlined_call_operand.vmem [shape: f32[1,128], index: 7, kind: input, shape index: {}]
  %s8 = inlined_call_operand.hbm [shape: f32[128,128], index: 8, kind: output, shape index: {}]
  %s9 = sld [smem:[#allocation0]]
  $region77: #{tpu_custom_call.1} parent=0
    _
  %s11 = ssub.s32 1, %s9
  %s12 = scalar_select 0, %s11, %s9
  $region1: #{tpu_custom_call.1} parent=0
    #allocation2 [shape = 'u8[65536]{0}', space=vmem, size = 0x10000, scoped, tag = 'input window, operand 0']
    #allocation3 [shape = 's32[2]{0}', space=sflag, size = 0x8, scoped, tag = 'scoped memory for tpu_custom_call.1']
    #allocation4 [shape = 's32[2]{0}', space=sflag, size = 0x8, scoped, tag = 'scoped memory for tpu_custom_call.1']
    #allocation5 [shape = 'u8[65536]{0}', space=vmem, size = 0x10000, scoped, tag = 'input window, operand 2, single buffered']
    #allocation6 [shape = 's32[1]{0}', space=sflag, size = 0x4, scoped, tag = 'scoped memory for tpu_custom_call.1']
    #allocation7 [shape = 'u8[65536]{0}', space=vmem, size = 0x10000, scoped, tag = 'input window, operand 6, single buffered']
    #allocation8 [shape = 'u8[65536]{0}', space=vmem, size = 0x10000, scoped, tag = 'output window, operand 0']
    %13 = vsyncpa [#allocation3], 0
    %s14 = scalar_lea.sflag [#allocation3], 1
    %15 = vsyncpa %s14, 0
    %16 = vsyncpa [#allocation6], 0
    %17 = vsyncpa [#allocation4], 0
    %s18 = scalar_lea.sflag [#allocation4], 1
    %19 = vsyncpa %s18, 0
    loop: start=0, step=1, limit=4
    $region2: #{tpu_custom_call.1} parent=1 // loop_pre_header
      _
    $region3: #{tpu_custom_call.1} parent=1 // loop_header
      %s21 = sphi 0, %s25
      %p22 = scmp.ge.s32.totalorder %s21, 4
      %s31 = sphi 0, %s33
      %s34 = sphi 0, %s31
      %s35 = sphi 0, %s34
      %s51 = sphi 0, %s35
      %s55 = sphi 0, %s55
      %s57 = sphi 0, %s55
      %s58 = sphi 0, %s57
      %s72 = sphi 0, %s58
      %s76 = sphi 0, %s76
      %s78 = sphi 0, %s76
      %s79 = sphi 0, %s78
      %s93 = sphi 0, %s79
      %s97 = sphi 0, %s97
      %s99 = sphi 0, %s97
      %s100 = sphi 0, %s99
      %s114 = sphi 0, %s100
      %s118 = sphi 0, %s118
      %s120 = sphi 0, %s118
      %s121 = sphi 0, %s120
      %s135 = sphi 0, %s121
      %s139 = sphi 0, %s139
      %s141 = sphi 0, %s139
      %s142 = sphi 0, %s141
      %s156 = sphi 0, %s142
      %s160 = sphi 0, %s160
      %s162 = sphi 0, %s160
      %s163 = sphi 0, %s162
      %s177 = sphi 0, %s163
      %s181 = sphi 0, %s181
      %s183 = sphi 0, %s181
      %s184 = sphi 0, %s183
      %s198 = sphi 0, %s184
      %s204 = sphi 0, %s206
      %s207 = sphi 0, %s204
      %s208 = sphi 0, %s207
      %s224 = sphi 0, %s208
    $region4: #{tpu_custom_call.1} parent=1 // loop_header_branch
      %24 = sbr.rel (%p22) target = $region8
    $region5: #{tpu_custom_call.1} parent=1 // loop_body
      %s26 = ssub.s32 %s21, 1
      %s27 = ssub.s32 %s21, 2
      %s28 = sadd.s32 %s21, 1
      %s29 = ssub.s32 %s21, %s28
      %p30 = scmp.eq.s32.totalorder %s29, 0
      %s32 = sadd.s32 %s31, 1
      %s33 = scalar_select %p30, %s31, %s32
      %p36 = pneg %p30
      %p37 = scmp.eq.s32.totalorder %s21, 1
      %p38 = por %p36, %p37
      %p39 = scmp.ne.s32.totalorder %s31, %s34
      %p40 = scmp.eq.s32.totalorder %s21, 0
      %p41 = por %p39, %p40
      %p42 = scmp.ne.s32.totalorder %s31, %s34
      %p43 = scmp.eq.s32.totalorder %s26, 1
      %p44 = por %p42, %p43
      %p45 = scmp.ne.s32.totalorder %s34, %s35
      %p46 = scmp.eq.s32.totalorder %s26, 0
      %p47 = por %p45, %p46
      %p48 = scmp.ne.s32.totalorder %s34, %s35
      %p49 = scmp.eq.s32.totalorder %s27, 1
      %p50 = por %p48, %p49
      %p52 = scmp.ne.s32.totalorder %s35, %s51
      %p53 = scmp.eq.s32.totalorder %s27, 0
      %p54 = por %p52, %p53
      %s56 = sadd.s32 %s55, 1
      %p59 = scmp.eq.s32.totalorder %s21, 1
      %p60 = scmp.ne.s32.totalorder %s55, %s57
      %p61 = scmp.eq.s32.totalorder %s21, 0
      %p62 = por %p60, %p61
      %p63 = scmp.ne.s32.totalorder %s55, %s57
      %p64 = scmp.eq.s32.totalorder %s26, 1
      %p65 = por %p63, %p64
      %p66 = scmp.ne.s32.totalorder %s57, %s58
      %p67 = scmp.eq.s32.totalorder %s26, 0
      %p68 = por %p66, %p67
      %p69 = scmp.ne.s32.totalorder %s57, %s58
      %p70 = scmp.eq.s32.totalorder %s27, 1
      %p71 = por %p69, %p70
      %p73 = scmp.ne.s32.totalorder %s58, %s72
      %p74 = scmp.eq.s32.totalorder %s27, 0
      %p75 = por %p73, %p74
      %s77 = sadd.s32 %s76, 1
      %p80 = scmp.eq.s32.totalorder %s21, 1
      %p81 = scmp.ne.s32.totalorder %s76, %s78
      %p82 = scmp.eq.s32.totalorder %s21, 0
      %p83 = por %p81, %p82
      %p84 = scmp.ne.s32.totalorder %s76, %s78
      %p85 = scmp.eq.s32.totalorder %s26, 1
      %p86 = por %p84, %p85
      %p87 = scmp.ne.s32.totalorder %s78, %s79
      %p88 = scmp.eq.s32.totalorder %s26, 0
      %p89 = por %p87, %p88
      %p90 = scmp.ne.s32.totalorder %s78, %s79
      %p91 = scmp.eq.s32.totalorder %s27, 1
      %p92 = por %p90, %p91
      %p94 = scmp.ne.s32.totalorder %s79, %s93
      %p95 = scmp.eq.s32.totalorder %s27, 0
      %p96 = por %p94, %p95
      %s98 = sadd.s32 %s97, 1
      %p101 = scmp.eq.s32.totalorder %s21, 1
      %p102 = scmp.ne.s32.totalorder %s97, %s99
      %p103 = scmp.eq.s32.totalorder %s21, 0
      %p104 = por %p102, %p103
      %p105 = scmp.ne.s32.totalorder %s97, %s99
      %p106 = scmp.eq.s32.totalorder %s26, 1
      %p107 = por %p105, %p106
      %p108 = scmp.ne.s32.totalorder %s99, %s100
      %p109 = scmp.eq.s32.totalorder %s26, 0
      %p110 = por %p108, %p109
      %p111 = scmp.ne.s32.totalorder %s99, %s100
      %p112 = scmp.eq.s32.totalorder %s27, 1
      %p113 = por %p111, %p112
      %p115 = scmp.ne.s32.totalorder %s100, %s114
      %p116 = scmp.eq.s32.totalorder %s27, 0
      %p117 = por %p115, %p116
      %s119 = sadd.s32 %s118, 1
      %p122 = scmp.eq.s32.totalorder %s21, 1
      %p123 = scmp.ne.s32.totalorder %s118, %s120
      %p124 = scmp.eq.s32.totalorder %s21, 0
      %p125 = por %p123, %p124
      %p126 = scmp.ne.s32.totalorder %s118, %s120
      %p127 = scmp.eq.s32.totalorder %s26, 1
      %p128 = por %p126, %p127
      %p129 = scmp.ne.s32.totalorder %s120, %s121
      %p130 = scmp.eq.s32.totalorder %s26, 0
      %p131 = por %p129, %p130
      %p132 = scmp.ne.s32.totalorder %s120, %s121
      %p133 = scmp.eq.s32.totalorder %s27, 1
      %p134 = por %p132, %p133
      %p136 = scmp.ne.s32.totalorder %s121, %s135
      %p137 = scmp.eq.s32.totalorder %s27, 0
      %p138 = por %p136, %p137
      %s140 = sadd.s32 %s139, 1
      %p143 = scmp.eq.s32.totalorder %s21, 1
      %p144 = scmp.ne.s32.totalorder %s139, %s141
      %p145 = scmp.eq.s32.totalorder %s21, 0
      %p146 = por %p144, %p145
      %p147 = scmp.ne.s32.totalorder %s139, %s141
      %p148 = scmp.eq.s32.totalorder %s26, 1
      %p149 = por %p147, %p148
      %p150 = scmp.ne.s32.totalorder %s141, %s142
      %p151 = scmp.eq.s32.totalorder %s26, 0
      %p152 = por %p150, %p151
      %p153 = scmp.ne.s32.totalorder %s141, %s142
      %p154 = scmp.eq.s32.totalorder %s27, 1
      %p155 = por %p153, %p154
      %p157 = scmp.ne.s32.totalorder %s142, %s156
      %p158 = scmp.eq.s32.totalorder %s27, 0
      %p159 = por %p157, %p158
      %s161 = sadd.s32 %s160, 1
      %p164 = scmp.eq.s32.totalorder %s21, 1
      %p165 = scmp.ne.s32.totalorder %s160, %s162
      %p166 = scmp.eq.s32.totalorder %s21, 0
      %p167 = por %p165, %p166
      %p168 = scmp.ne.s32.totalorder %s160, %s162
      %p169 = scmp.eq.s32.totalorder %s26, 1
      %p170 = por %p168, %p169
      %p171 = scmp.ne.s32.totalorder %s162, %s163
      %p172 = scmp.eq.s32.totalorder %s26, 0
      %p173 = por %p171, %p172
      %p174 = scmp.ne.s32.totalorder %s162, %s163
      %p175 = scmp.eq.s32.totalorder %s27, 1
      %p176 = por %p174, %p175
      %p178 = scmp.ne.s32.totalorder %s163, %s177
      %p179 = scmp.eq.s32.totalorder %s27, 0
      %p180 = por %p178, %p179
      %s182 = sadd.s32 %s181, 1
      %p185 = scmp.eq.s32.totalorder %s21, 1
      %p186 = scmp.ne.s32.totalorder %s181, %s183
      %p187 = scmp.eq.s32.totalorder %s21, 0
      %p188 = por %p186, %p187
      %p189 = scmp.ne.s32.totalorder %s181, %s183
      %p190 = scmp.eq.s32.totalorder %s26, 1
      %p191 = por %p189, %p190
      %p192 = scmp.ne.s32.totalorder %s183, %s184
      %p193 = scmp.eq.s32.totalorder %s26, 0
      %p194 = por %p192, %p193
      %p195 = scmp.ne.s32.totalorder %s183, %s184
      %p196 = scmp.eq.s32.totalorder %s27, 1
      %p197 = por %p195, %p196
      %p199 = scmp.ne.s32.totalorder %s184, %s198
      %p200 = scmp.eq.s32.totalorder %s27, 0
      %p201 = por %p199, %p200
      %s202 = ssub.s32 %s21, %s28
      %p203 = scmp.eq.s32.totalorder %s202, 0
      %s205 = sadd.s32 %s204, 1
      %s206 = scalar_select %p203, %s204, %s205
      %p209 = pneg %p203
      %p210 = scmp.eq.s32.totalorder %s21, 1
      %p211 = por %p209, %p210
      %p212 = scmp.ne.s32.totalorder %s204, %s207
      %p213 = scmp.eq.s32.totalorder %s21, 0
      %p214 = por %p212, %p213
      %p215 = scmp.ne.s32.totalorder %s204, %s207
      %p216 = scmp.eq.s32.totalorder %s26, 1
      %p217 = por %p215, %p216
      %p218 = scmp.ne.s32.totalorder %s207, %s208
      %p219 = scmp.eq.s32.totalorder %s26, 0
      %p220 = por %p218, %p219
      %p221 = scmp.ne.s32.totalorder %s207, %s208
      %p222 = scmp.eq.s32.totalorder %s27, 1
      %p223 = por %p221, %p222
      %p225 = scmp.ne.s32.totalorder %s208, %s224
      %p226 = scmp.eq.s32.totalorder %s27, 0
      %p227 = por %p225, %p226
      %p228 = scmp.le.s32.totalorder 1, %s21
      %p229 = scmp.lt.s32.totalorder %s21, 3
      %p230 = pnand %p228, %p229
      %p231 = pneg %p230
      // Predicated region
      $region9: #{tpu_custom_call.1} parent=5 // pred_check
        _
      $region10: #{tpu_custom_call.1} parent=5 // pred_check_branch
        %233 = sbr.rel (%p230) target = $region12
      $region11: #{tpu_custom_call.1} parent=5 // pred_region
        %s234 = ssub.s32 %s21, 1
        // Predicated region
        $region13: #{tpu_custom_call.1} parent=11 // pred_check
          %p235 = pneg %p68
        $region14: #{tpu_custom_call.1} parent=11 // pred_check_branch
          %237 = sbr.rel (%p235) target = $region16
        $region15: #{tpu_custom_call.1} parent=11 // pred_region
          _
        $region16: #{tpu_custom_call.1} parent=11 // pred_fallthru
          _
        // Predicated region
        $region17: #{tpu_custom_call.1} parent=11 // pred_check
          %p238 = pneg %p89
        $region18: #{tpu_custom_call.1} parent=11 // pred_check_branch
          %240 = sbr.rel (%p238) target = $region20
        $region19: #{tpu_custom_call.1} parent=11 // pred_region
          %s242 = ssub.s32 2048, 2048
          %243 = vsyncadd [#allocation6], %s242
          %s244 = sshll.u32 [#allocation5], 4
          %s245 = int_to_ptr.vmem [resolvable:$true] %s244
          %250 = dma.hbm_to_vmem [thread:$0]  %s2, 2048, %s245, [#allocation6], 128, 128, 8
        $region20: #{tpu_custom_call.1} parent=11 // pred_fallthru
          _
        // Predicated region
        $region21: #{tpu_custom_call.1} parent=11 // pred_check
          %p251 = pneg %p110
        $region22: #{tpu_custom_call.1} parent=11 // pred_check_branch
          %253 = sbr.rel (%p251) target = $region24
        $region23: #{tpu_custom_call.1} parent=11 // pred_region
          _
        $region24: #{tpu_custom_call.1} parent=11 // pred_fallthru
          _
        // Predicated region
        $region25: #{tpu_custom_call.1} parent=11 // pred_check
          %p254 = pneg %p131
        $region26: #{tpu_custom_call.1} parent=11 // pred_check_branch
          %256 = sbr.rel (%p254) target = $region28
        $region27: #{tpu_custom_call.1} parent=11 // pred_region
          _
        $region28: #{tpu_custom_call.1} parent=11 // pred_fallthru
          _
        // Predicated region
        $region29: #{tpu_custom_call.1} parent=11 // pred_check
          %p257 = pneg %p152
        $region30: #{tpu_custom_call.1} parent=11 // pred_check_branch
          %259 = sbr.rel (%p257) target = $region32
        $region31: #{tpu_custom_call.1} parent=11 // pred_region
          _
        $region32: #{tpu_custom_call.1} parent=11 // pred_fallthru
          _
        // Predicated region
        $region33: #{tpu_custom_call.1} parent=11 // pred_check
          %p260 = pneg %p173
        $region34: #{tpu_custom_call.1} parent=11 // pred_check_branch
          %262 = sbr.rel (%p260) target = $region36
        $region35: #{tpu_custom_call.1} parent=11 // pred_region
          %s264 = ssub.s32 2048, 2048
          %265 = vsyncadd [#allocation6], %s264
          %s266 = sshll.u32 [#allocation7], 4
          %s267 = int_to_ptr.vmem [resolvable:$true] %s266
          %272 = dma.hbm_to_vmem [thread:$0]  %s6, 2048, %s267, [#allocation6], 128, 128, 8
        $region36: #{tpu_custom_call.1} parent=11 // pred_fallthru
          _
        // Predicated region
        $region37: #{tpu_custom_call.1} parent=11 // pred_check
          %p273 = pneg %p194
        $region38: #{tpu_custom_call.1} parent=11 // pred_check_branch
          %275 = sbr.rel (%p273) target = $region40
        $region39: #{tpu_custom_call.1} parent=11 // pred_region
          _
        $region40: #{tpu_custom_call.1} parent=11 // pred_fallthru
          _
      $region12: #{tpu_custom_call.1} parent=5 // pred_fallthru
        _
      %p276 = scmp.lt.s32.totalorder %s21, 2
      // Predicated region
      $region41: #{tpu_custom_call.1} parent=5 // pred_check
        %p277 = pneg %p276
      $region42: #{tpu_custom_call.1} parent=5 // pred_check_branch
        %279 = sbr.rel (%p277) target = $region44
      $region43: #{tpu_custom_call.1} parent=5 // pred_region
        // Predicated region
        $region45: #{tpu_custom_call.1} parent=43 // pred_check
          %p280 = pneg %p41
        $region46: #{tpu_custom_call.1} parent=43 // pred_check_branch
          %282 = sbr.rel (%p280) target = $region48
        $region47: #{tpu_custom_call.1} parent=43 // pred_region
          %s283 = sand.u32 %s31, 1
          %s284 = scalar_lea.sflag [#allocation3], %s283
          %s285 = sand.u32 %s31, 1
          %s286 = smul.addr %s285, 64
          %s287 = scalar_lea.vmem [#allocation2], %s286
          %s288 = smul.u32 8, %s21
          %s290 = ssub.s32 1024, 1024
          %291 = vsyncadd %s284, %s290
          %s292 = smul.addr %s288, 128
          %s293 = scalar_lea.hbm %s0, %s292
          %s294 = sshll.u32 %s287, 4
          %s295 = int_to_ptr.vmem [resolvable:$true] %s294
          %300 = dma.hbm_to_vmem [thread:$0]  %s293, 1024, %s295, %s284, 128, 128, 8
        $region48: #{tpu_custom_call.1} parent=43 // pred_fallthru
          _
      $region44: #{tpu_custom_call.1} parent=5 // pred_fallthru
        _
      %p301 = scmp.le.s32.totalorder 1, %s21
      %p302 = scmp.lt.s32.totalorder %s21, 3
      %p303 = pnand %p301, %p302
      %p304 = pneg %p303
      // Predicated region
      $region49: #{tpu_custom_call.1} parent=5 // pred_check
        _
      $region50: #{tpu_custom_call.1} parent=5 // pred_check_branch
        %306 = sbr.rel (%p303) target = $region52
      $region51: #{tpu_custom_call.1} parent=5 // pred_region
        %s307 = ssub.s32 %s21, 1
        %s308 = sand.u32 %s34, 1
        %s309 = scalar_lea.sflag [#allocation3], %s308
        %s310 = sand.u32 %s34, 1
        %s311 = smul.addr %s310, 64
        %s312 = scalar_lea.vmem [#allocation2], %s311
        // Predicated region
        $region53: #{tpu_custom_call.1} parent=51 // pred_check
          %p313 = pneg %p47
        $region54: #{tpu_custom_call.1} parent=51 // pred_check_branch
          %315 = sbr.rel (%p313) target = $region56
        $region55: #{tpu_custom_call.1} parent=51 // pred_region
          %316 = dma.done %s309, 1024
        $region56: #{tpu_custom_call.1} parent=51 // pred_fallthru
          _
        // Predicated region
        $region57: #{tpu_custom_call.1} parent=51 // pred_check
          %p317 = pneg %p89
        $region58: #{tpu_custom_call.1} parent=51 // pred_check_branch
          %319 = sbr.rel (%p317) target = $region60
        $region59: #{tpu_custom_call.1} parent=51 // pred_region
          %320 = dma.done [#allocation6], 2048
        $region60: #{tpu_custom_call.1} parent=51 // pred_fallthru
          _
        // Predicated region
        $region61: #{tpu_custom_call.1} parent=51 // pred_check
          %p321 = pneg %p173
        $region62: #{tpu_custom_call.1} parent=51 // pred_check_branch
          %323 = sbr.rel (%p321) target = $region64
        $region63: #{tpu_custom_call.1} parent=51 // pred_region
          %324 = dma.done [#allocation6], 2048
        $region64: #{tpu_custom_call.1} parent=51 // pred_fallthru
          _
        %s325 = sand.u32 %s34, 1
        %s326 = scalar_lea.sflag [#allocation3], %s325
        %s327 = sand.u32 %s34, 1
        %s328 = smul.addr %s327, 64
        %s329 = scalar_lea.vmem [#allocation2], %s328
        %p330 = pneg %p47
        %p331 = pneg %p44
        %p332 = pneg %p68
        %p333 = pneg %p65
        %p334 = pneg %p89
        %p335 = pneg %p86
        %p336 = pneg %p110
        %p337 = pneg %p107
        %p338 = pneg %p131
        %p339 = pneg %p128
        %p340 = pneg %p152
        %p341 = pneg %p149
        %p342 = pneg %p173
        %p343 = pneg %p170
        %p344 = pneg %p194
        %p345 = pneg %p191
        %p346 = pneg %p220
        %p347 = pneg %p217
        %s348 = sand.u32 %s207, 1
        %s349 = scalar_lea.sflag [#allocation4], %s348
        %s350 = sand.u32 %s207, 1
        %s351 = smul.addr %s350, 64
        %s352 = scalar_lea.vmem [#allocation8], %s351
        %s353 = smul.u32 8, %s26
        %s354 = smul.u32 8, %s26
        %v355 = vld [vmem:[%s312] sm:$0xff]
        %v356 = vld [vmem:[%s312 + $0x8] sm:$0xff]
        %v357 = vld [vmem:[%s312 + $0x10] sm:$0xff]
        %v358 = vld [vmem:[%s312 + $0x18] sm:$0xff]
        %v359 = vld [vmem:[%s312 + $0x20] sm:$0xff]
        %v360 = vld [vmem:[%s312 + $0x28] sm:$0xff]
        %v361 = vld [vmem:[%s312 + $0x30] sm:$0xff]
        %v362 = vld [vmem:[%s312 + $0x38] sm:$0xff]
        %v363 = vld [vmem:[#allocation5] sm:$0xff]
        %v364 = vld [vmem:[#allocation5 + $0x8] sm:$0xff]
        %v365 = vld [vmem:[#allocation5 + $0x10] sm:$0xff]
        %v366 = vld [vmem:[#allocation5 + $0x18] sm:$0xff]
        %v367 = vld [vmem:[#allocation5 + $0x20] sm:$0xff]
        %v368 = vld [vmem:[#allocation5 + $0x28] sm:$0xff]
        %v369 = vld [vmem:[#allocation5 + $0x30] sm:$0xff]
        %v370 = vld [vmem:[#allocation5 + $0x38] sm:$0xff]
        %v371 = vld [vmem:[#allocation5 + $0x40] sm:$0xff]
        %v372 = vld [vmem:[#allocation5 + $0x48] sm:$0xff]
        %v373 = vld [vmem:[#allocation5 + $0x50] sm:$0xff]
        %v374 = vld [vmem:[#allocation5 + $0x58] sm:$0xff]
        %v375 = vld [vmem:[#allocation5 + $0x60] sm:$0xff]
        %v376 = vld [vmem:[#allocation5 + $0x68] sm:$0xff]
        %v377 = vld [vmem:[#allocation5 + $0x70] sm:$0xff]
        %v378 = vld [vmem:[#allocation5 + $0x78] sm:$0xff]
        %v379 = vld [vmem:[%s3] sm:$0x1]
        %v381 = vlaneseq
        %v382 = vshrl.u32 %v381, 7
        %v383 = vsub.s32 0, %v382
        %v384 = vrot.slane %v379, %v383
        %386 = vmatprep.subr.mxu0 0.0
        %387 = vmatpush1.msra.mxu0 %v363
        %388 = vmatprep.subr.mxu0 0.0
        %389 = vmatpush1.msra.mxu0 %v364
        %390 = vmatprep.subr.mxu0 0.0
        %391 = vmatpush1.msra.mxu0 %v365
        %392 = vmatprep.subr.mxu0 0.0
        %393 = vmatpush1.msra.mxu0 %v366
        %394 = vmatprep.subr.mxu0 0.0
        %395 = vmatpush1.msra.mxu0 %v367
        %396 = vmatprep.subr.mxu0 0.0
        %397 = vmatpush1.msra.mxu0 %v368
        %398 = vmatprep.subr.mxu0 0.0
        %399 = vmatpush1.msra.mxu0 %v369
        %400 = vmatprep.subr.mxu0 0.0
        %401 = vmatpush1.msra.mxu0 %v370
        %402 = vmatprep.subr.mxu0 0.0
        %403 = vmatpush1.msra.mxu0 %v371
        %404 = vmatprep.subr.mxu0 0.0
        %405 = vmatpush1.msra.mxu0 %v372
        %406 = vmatprep.subr.mxu0 0.0
        %407 = vmatpush1.msra.mxu0 %v373
        %408 = vmatprep.subr.mxu0 0.0
        %409 = vmatpush1.msra.mxu0 %v374
        %410 = vmatprep.subr.mxu0 0.0
        %411 = vmatpush1.msra.mxu0 %v375
        %412 = vmatprep.subr.mxu0 0.0
        %413 = vmatpush1.msra.mxu0 %v376
        %414 = vmatprep.subr.mxu0 0.0
        %415 = vmatpush1.msra.mxu0 %v377
        %416 = vmatprep.subr.mxu0 0.0
        %417 = vmatpush1.msra.mxu0 %v378
        %418 = vmatprep.subr.mxu0 0.0
        %419 = vmatpush1.msra.mxu0 0.0
        %420 = vmatprep.subr.mxu0 0.0
        %421 = vmatpush1.msra.mxu0 0.0
        %422 = vmatprep.subr.mxu0 0.0
        %423 = vmatpush1.msra.mxu0 0.0
        %424 = vmatprep.subr.mxu0 0.0
        %425 = vmatpush1.msra.mxu0 0.0
        %426 = vmatprep.subr.mxu0 0.0
        %427 = vmatpush1.msra.mxu0 0.0
        %428 = vmatprep.subr.mxu0 0.0
        %429 = vmatpush1.msra.mxu0 0.0
        %430 = vmatprep.subr.mxu0 0.0
        %431 = vmatpush1.msra.mxu0 0.0
        %432 = vmatprep.subr.mxu0 0.0
        %433 = vmatpush1.msra.mxu0 0.0
        %434 = vmatprep.subr.mxu0 0.0
        %435 = vmatpush1.msra.mxu0 0.0
        %436 = vmatprep.subr.mxu0 0.0
        %437 = vmatpush1.msra.mxu0 0.0
        %438 = vmatprep.subr.mxu0 0.0
        %439 = vmatpush1.msra.mxu0 0.0
        %440 = vmatprep.subr.mxu0 0.0
        %441 = vmatpush1.msra.mxu0 0.0
        %442 = vmatprep.subr.mxu0 0.0
        %443 = vmatpush1.msra.mxu0 0.0
        %444 = vmatprep.subr.mxu0 0.0
        %445 = vmatpush1.msra.mxu0 0.0
        %446 = vmatprep.subr.mxu0 0.0
        %447 = vmatpush1.msra.mxu0 0.0
        %448 = vmatprep.subr.mxu0 0.0
        %449 = vmatpush1.msra.mxu0 0.0
        %450 = vmatprep.mubr.f32.mxu0 0.0
        %451 = vmatmul.mubr.f32.gmra.mrb[0].mxu0 %v355
        %v452 = vpop.f32.mrb[0].mxu0
        %v453 = vadd.f32 %v384, %v452
        %v454 = vpop.f32.mrb[0].mxu0
        %455 = vmatprep.mubr.f32.mxu0 0.0
        %456 = vmatmul.mubr.f32.gmra.mrb[0].mxu0 %v356
        %v457 = vpop.f32.mrb[0].mxu0
        %v458 = vadd.f32 %v384, %v457
        %v459 = vpop.f32.mrb[0].mxu0
        %460 = vmatprep.mubr.f32.mxu0 0.0
        %461 = vmatmul.mubr.f32.gmra.mrb[0].mxu0 %v357
        %v462 = vpop.f32.mrb[0].mxu0
        %v463 = vadd.f32 %v384, %v462
        %v464 = vpop.f32.mrb[0].mxu0
        %465 = vmatprep.mubr.f32.mxu0 0.0
        %466 = vmatmul.mubr.f32.gmra.mrb[0].mxu0 %v358
        %v467 = vpop.f32.mrb[0].mxu0
        %v468 = vadd.f32 %v384, %v467
        %v469 = vpop.f32.mrb[0].mxu0
        %470 = vmatprep.mubr.f32.mxu0 0.0
        %471 = vmatmul.mubr.f32.gmra.mrb[0].mxu0 %v359
        %v472 = vpop.f32.mrb[0].mxu0
        %v473 = vadd.f32 %v384, %v472
        %v474 = vpop.f32.mrb[0].mxu0
        %475 = vmatprep.mubr.f32.mxu0 0.0
        %476 = vmatmul.mubr.f32.gmra.mrb[0].mxu0 %v360
        %v477 = vpop.f32.mrb[0].mxu0
        %v478 = vadd.f32 %v384, %v477
        %v479 = vpop.f32.mrb[0].mxu0
        %480 = vmatprep.mubr.f32.mxu0 0.0
        %481 = vmatmul.mubr.f32.gmra.mrb[0].mxu0 %v361
        %v482 = vpop.f32.mrb[0].mxu0
        %v483 = vadd.f32 %v384, %v482
        %v484 = vpop.f32.mrb[0].mxu0
        %485 = vmatprep.mubr.f32.mxu0 0.0
        %486 = vmatmul.mubr.f32.gmra.mrb[0].mxu0 %v362
        %v487 = vpop.f32.mrb[0].mxu0
        %v488 = vadd.f32 %v384, %v487
        %v489 = vpop.f32.mrb[0].mxu0
        %490 = vdwg.mxu0
        %v491 = vadd.f32 %v453, 3.0
        %v492 = vadd.f32 %v458, 3.0
        %v493 = vadd.f32 %v463, 3.0
        %v494 = vadd.f32 %v468, 3.0
        %v495 = vadd.f32 %v473, 3.0
        %v496 = vadd.f32 %v478, 3.0
        %v497 = vadd.f32 %v483, 3.0
        %v498 = vadd.f32 %v488, 3.0
        %v499 = vmax.f32 %v491, 0.0
        %v500 = vmax.f32 %v492, 0.0
        %v501 = vmax.f32 %v493, 0.0
        %v502 = vmax.f32 %v494, 0.0
        %v503 = vmax.f32 %v495, 0.0
        %v504 = vmax.f32 %v496, 0.0
        %v505 = vmax.f32 %v497, 0.0
        %v506 = vmax.f32 %v498, 0.0
        %v507 = vmin.f32 %v499, 6.0
        %v508 = vmin.f32 %v500, 6.0
        %v509 = vmin.f32 %v501, 6.0
        %v510 = vmin.f32 %v502, 6.0
        %v511 = vmin.f32 %v503, 6.0
        %v512 = vmin.f32 %v504, 6.0
        %v513 = vmin.f32 %v505, 6.0
        %v514 = vmin.f32 %v506, 6.0
        %v515 = vmul.f32 %v453, %v507
        %v516 = vmul.f32 %v458, %v508
        %v517 = vmul.f32 %v463, %v509
        %v518 = vmul.f32 %v468, %v510
        %v519 = vmul.f32 %v473, %v511
        %v520 = vmul.f32 %v478, %v512
        %v521 = vmul.f32 %v483, %v513
        %v522 = vmul.f32 %v488, %v514
        %v523 = vmul.f32 %v515, 0.16666667
        %v524 = vmul.f32 %v516, 0.16666667
        %v525 = vmul.f32 %v517, 0.16666667
        %v526 = vmul.f32 %v518, 0.16666667
        %v527 = vmul.f32 %v519, 0.16666667
        %v528 = vmul.f32 %v520, 0.16666667
        %v529 = vmul.f32 %v521, 0.16666667
        %v530 = vmul.f32 %v522, 0.16666667
        %v531 = vld [vmem:[%s4] sm:$0xff]
        %v532 = vld [vmem:[%s4 + $0x8] sm:$0x1]
        %v533 = vld [vmem:[%s1] sm:$0xff]
        %v534 = vld [vmem:[%s1 + $0x8] sm:$0xff]
        %v535 = vld [vmem:[%s1 + $0x10] sm:$0xff]
        %v536 = vld [vmem:[%s1 + $0x18] sm:$0xff]
        %v537 = vld [vmem:[%s1 + $0x20] sm:$0xff]
        %v538 = vld [vmem:[%s1 + $0x28] sm:$0xff]
        %v539 = vld [vmem:[%s1 + $0x30] sm:$0xff]
        %v540 = vld [vmem:[%s1 + $0x38] sm:$0xff]
        %v541 = vlaneseq
        %v542 = vshrl.u32 %v541, 7
        %v543 = vsub.s32 4, %v542
        %v544 = vrot.slane %v531, %v543
        %v545 = vmul.f32 %v523, %v544
        %v546 = vmul.f32 %v524, %v544
        %v547 = vmul.f32 %v525, %v544
        %v548 = vmul.f32 %v526, %v544
        %v549 = vmul.f32 %v527, %v544
        %v550 = vmul.f32 %v528, %v544
        %v551 = vmul.f32 %v529, %v544
        %v552 = vmul.f32 %v530, %v544
        %v553 = vld [vmem:[%s5] sm:$0x1]
        %v555 = vlaneseq
        %v556 = vshrl.u32 %v555, 7
        %v557 = vsub.s32 0, %v556
        %v558 = vrot.slane %v553, %v557
        %v560 = vadd.f32 %v545, %v558
        %v561 = vadd.f32 %v546, %v558
        %v562 = vadd.f32 %v547, %v558
        %v563 = vadd.f32 %v548, %v558
        %v564 = vadd.f32 %v549, %v558
        %v565 = vadd.f32 %v550, %v558
        %v566 = vadd.f32 %v551, %v558
        %v567 = vadd.f32 %v552, %v558
        %v568 = vrot.slane %v523, 7
        %v569 = vrot.slane %v524, 7
        %v570 = vrot.slane %v525, 7
        %v571 = vrot.slane %v526, 7
        %v572 = vrot.slane %v527, 7
        %v573 = vrot.slane %v528, 7
        %v574 = vrot.slane %v529, 7
        %v575 = vrot.slane %v530, 7
        %v576 = vlaneseq
        %v577 = vshrl.u32 %v576, 7
        %vm578 = vcmp.lt.s32.totalorder %v577, 1
        %v579 = vsel %vm578, %v574, %v575
        %v580 = vsel %vm578, %v573, %v574
        %v581 = vsel %vm578, %v572, %v573
        %v582 = vsel %vm578, %v571, %v572
        %v583 = vsel %vm578, %v570, %v571
        %v584 = vsel %vm578, %v569, %v570
        %v585 = vsel %vm578, %v568, %v569
        %v586 = vsel %vm578, %v575, %v568
        %v587 = vlaneseq
        %v588 = vshrl.u32 %v587, 7
        %v589 = vsub.s32 0, %v588
        %v590 = vrot.slane %v531, %v589
        %v591 = vmul.f32 %v579, %v590
        %v592 = vmul.f32 %v586, %v590
        %v593 = vmul.f32 %v585, %v590
        %v594 = vmul.f32 %v584, %v590
        %v595 = vmul.f32 %v583, %v590
        %v596 = vmul.f32 %v582, %v590
        %v597 = vmul.f32 %v581, %v590
        %v598 = vmul.f32 %v580, %v590
        %600 = vset.pattern.permute.xlu0 0
        %601 = vperm.xlu0 %600, %v533
        %v602 = vpop.permute.xlu0 %601
        %605 = vset.pattern.permute.xlu0 0
        %606 = vperm.xlu0 %605, %v534
        %v607 = vpop.permute.xlu0 %606
        %610 = vset.pattern.permute.xlu0 0
        %611 = vperm.xlu0 %610, %v535
        %v612 = vpop.permute.xlu0 %611
        %615 = vset.pattern.permute.xlu0 0
        %616 = vperm.xlu0 %615, %v536
        %v617 = vpop.permute.xlu0 %616
        %620 = vset.pattern.permute.xlu0 0
        %621 = vperm.xlu0 %620, %v537
        %v622 = vpop.permute.xlu0 %621
        %625 = vset.pattern.permute.xlu0 0
        %626 = vperm.xlu0 %625, %v538
        %v627 = vpop.permute.xlu0 %626
        %630 = vset.pattern.permute.xlu0 0
        %631 = vperm.xlu0 %630, %v539
        %v632 = vpop.permute.xlu0 %631
        %635 = vset.pattern.permute.xlu0 0
        %636 = vperm.xlu0 %635, %v540
        %v637 = vpop.permute.xlu0 %636
        %v639 = vmul.f32 %v591, %v602
        %v640 = vmul.f32 %v592, %v607
        %v641 = vmul.f32 %v593, %v612
        %v642 = vmul.f32 %v594, %v617
        %v643 = vmul.f32 %v595, %v622
        %v644 = vmul.f32 %v596, %v627
        %v645 = vmul.f32 %v597, %v632
        %v646 = vmul.f32 %v598, %v637
        %v647 = vadd.f32 %v560, %v639
        %v648 = vadd.f32 %v561, %v640
        %v649 = vadd.f32 %v562, %v641
        %v650 = vadd.f32 %v563, %v642
        %v651 = vadd.f32 %v564, %v643
        %v652 = vadd.f32 %v565, %v644
        %v653 = vadd.f32 %v566, %v645
        %v654 = vadd.f32 %v567, %v646
        %v655 = vlaneseq
        %v656 = vshrl.u32 %v655, 7
        %v657 = vsub.s32 1, %v656
        %v658 = vrot.slane %v531, %v657
        %v659 = vmul.f32 %v530, %v658
        %v660 = vmul.f32 %v523, %v658
        %v661 = vmul.f32 %v524, %v658
        %v662 = vmul.f32 %v525, %v658
        %v663 = vmul.f32 %v526, %v658
        %v664 = vmul.f32 %v527, %v658
        %v665 = vmul.f32 %v528, %v658
        %v666 = vmul.f32 %v529, %v658
        %667 = vset.pattern.permute.xlu0 1
        %668 = vperm.xlu0 %667, %v533
        %v669 = vpop.permute.xlu0 %668
        %671 = vset.pattern.permute.xlu0 1
        %672 = vperm.xlu0 %671, %v534
        %v673 = vpop.permute.xlu0 %672
        %675 = vset.pattern.permute.xlu0 1
        %676 = vperm.xlu0 %675, %v535
        %v677 = vpop.permute.xlu0 %676
        %679 = vset.pattern.permute.xlu0 1
        %680 = vperm.xlu0 %679, %v536
        %v681 = vpop.permute.xlu0 %680
        %683 = vset.pattern.permute.xlu0 1
        %684 = vperm.xlu0 %683, %v537
        %v685 = vpop.permute.xlu0 %684
        %687 = vset.pattern.permute.xlu0 1
        %688 = vperm.xlu0 %687, %v538
        %v689 = vpop.permute.xlu0 %688
        %691 = vset.pattern.permute.xlu0 1
        %692 = vperm.xlu0 %691, %v539
        %v693 = vpop.permute.xlu0 %692
        %695 = vset.pattern.permute.xlu0 1
        %696 = vperm.xlu0 %695, %v540
        %v697 = vpop.permute.xlu0 %696
        %v699 = vmul.f32 %v659, %v669
        %v700 = vmul.f32 %v660, %v673
        %v701 = vmul.f32 %v661, %v677
        %v702 = vmul.f32 %v662, %v681
        %v703 = vmul.f32 %v663, %v685
        %v704 = vmul.f32 %v664, %v689
        %v705 = vmul.f32 %v665, %v693
        %v706 = vmul.f32 %v666, %v697
        %v707 = vadd.f32 %v647, %v699
        %v708 = vadd.f32 %v648, %v700
        %v709 = vadd.f32 %v649, %v701
        %v710 = vadd.f32 %v650, %v702
        %v711 = vadd.f32 %v651, %v703
        %v712 = vadd.f32 %v652, %v704
        %v713 = vadd.f32 %v653, %v705
        %v714 = vadd.f32 %v654, %v706
        %v715 = vrot.slane %v523, 1
        %v716 = vrot.slane %v524, 1
        %v717 = vrot.slane %v525, 1
        %v718 = vrot.slane %v526, 1
        %v719 = vrot.slane %v527, 1
        %v720 = vrot.slane %v528, 1
        %v721 = vrot.slane %v529, 1
        %v722 = vrot.slane %v530, 1
        %vm723 = vcmp.lt.s32.totalorder %v577, 7
        %v724 = vsel %vm723, %v721, %v722
        %v725 = vsel %vm723, %v720, %v721
        %v726 = vsel %vm723, %v719, %v720
        %v727 = vsel %vm723, %v718, %v719
        %v728 = vsel %vm723, %v717, %v718
        %v729 = vsel %vm723, %v716, %v717
        %v730 = vsel %vm723, %v715, %v716
        %v731 = vsel %vm723, %v722, %v715
        %v732 = vlaneseq
        %v733 = vshrl.u32 %v732, 7
        %v734 = vsub.s32 2, %v733
        %v735 = vrot.slane %v531, %v734
        %v736 = vmul.f32 %v731, %v735
        %v737 = vmul.f32 %v730, %v735
        %v738 = vmul.f32 %v729, %v735
        %v739 = vmul.f32 %v728, %v735
        %v740 = vmul.f32 %v727, %v735
        %v741 = vmul.f32 %v726, %v735
        %v742 = vmul.f32 %v725, %v735
        %v743 = vmul.f32 %v724, %v735
        %744 = vset.pattern.permute.xlu0 2
        %745 = vperm.xlu0 %744, %v533
        %v746 = vpop.permute.xlu0 %745
        %748 = vset.pattern.permute.xlu0 2
        %749 = vperm.xlu0 %748, %v534
        %v750 = vpop.permute.xlu0 %749
        %752 = vset.pattern.permute.xlu0 2
        %753 = vperm.xlu0 %752, %v535
        %v754 = vpop.permute.xlu0 %753
        %756 = vset.pattern.permute.xlu0 2
        %757 = vperm.xlu0 %756, %v536
        %v758 = vpop.permute.xlu0 %757
        %760 = vset.pattern.permute.xlu0 2
        %761 = vperm.xlu0 %760, %v537
        %v762 = vpop.permute.xlu0 %761
        %764 = vset.pattern.permute.xlu0 2
        %765 = vperm.xlu0 %764, %v538
        %v766 = vpop.permute.xlu0 %765
        %768 = vset.pattern.permute.xlu0 2
        %769 = vperm.xlu0 %768, %v539
        %v770 = vpop.permute.xlu0 %769
        %772 = vset.pattern.permute.xlu0 2
        %773 = vperm.xlu0 %772, %v540
        %v774 = vpop.permute.xlu0 %773
        %v776 = vmul.f32 %v736, %v746
        %v777 = vmul.f32 %v737, %v750
        %v778 = vmul.f32 %v738, %v754
        %v779 = vmul.f32 %v739, %v758
        %v780 = vmul.f32 %v740, %v762
        %v781 = vmul.f32 %v741, %v766
        %v782 = vmul.f32 %v742, %v770
        %v783 = vmul.f32 %v743, %v774
        %v784 = vadd.f32 %v707, %v776
        %v785 = vadd.f32 %v708, %v777
        %v786 = vadd.f32 %v709, %v778
        %v787 = vadd.f32 %v710, %v779
        %v788 = vadd.f32 %v711, %v780
        %v789 = vadd.f32 %v712, %v781
        %v790 = vadd.f32 %v713, %v782
        %v791 = vadd.f32 %v714, %v783
        %v792 = vlaneseq
        %v793 = vshrl.u32 %v792, 7
        %v794 = vsub.s32 3, %v793
        %v795 = vrot.slane %v531, %v794
        %v796 = vmul.f32 %v586, %v795
        %v797 = vmul.f32 %v585, %v795
        %v798 = vmul.f32 %v584, %v795
        %v799 = vmul.f32 %v583, %v795
        %v800 = vmul.f32 %v582, %v795
        %v801 = vmul.f32 %v581, %v795
        %v802 = vmul.f32 %v580, %v795
        %v803 = vmul.f32 %v579, %v795
        %804 = vset.pattern.permute.xlu0 3
        %805 = vperm.xlu0 %804, %v533
        %v806 = vpop.permute.xlu0 %805
        %808 = vset.pattern.permute.xlu0 3
        %809 = vperm.xlu0 %808, %v534
        %v810 = vpop.permute.xlu0 %809
        %812 = vset.pattern.permute.xlu0 3
        %813 = vperm.xlu0 %812, %v535
        %v814 = vpop.permute.xlu0 %813
        %816 = vset.pattern.permute.xlu0 3
        %817 = vperm.xlu0 %816, %v536
        %v818 = vpop.permute.xlu0 %817
        %820 = vset.pattern.permute.xlu0 3
        %821 = vperm.xlu0 %820, %v537
        %v822 = vpop.permute.xlu0 %821
        %824 = vset.pattern.permute.xlu0 3
        %825 = vperm.xlu0 %824, %v538
        %v826 = vpop.permute.xlu0 %825
        %828 = vset.pattern.permute.xlu0 3
        %829 = vperm.xlu0 %828, %v539
        %v830 = vpop.permute.xlu0 %829
        %832 = vset.pattern.permute.xlu0 3
        %833 = vperm.xlu0 %832, %v540
        %v834 = vpop.permute.xlu0 %833
        %v836 = vmul.f32 %v796, %v806
        %v837 = vmul.f32 %v797, %v810
        %v838 = vmul.f32 %v798, %v814
        %v839 = vmul.f32 %v799, %v818
        %v840 = vmul.f32 %v800, %v822
        %v841 = vmul.f32 %v801, %v826
        %v842 = vmul.f32 %v802, %v830
        %v843 = vmul.f32 %v803, %v834
        %v844 = vadd.f32 %v784, %v836
        %v845 = vadd.f32 %v785, %v837
        %v846 = vadd.f32 %v786, %v838
        %v847 = vadd.f32 %v787, %v839
        %v848 = vadd.f32 %v788, %v840
        %v849 = vadd.f32 %v789, %v841
        %v850 = vadd.f32 %v790, %v842
        %v851 = vadd.f32 %v791, %v843
        %v852 = vlaneseq
        %v853 = vshrl.u32 %v852, 7
        %v854 = vsub.s32 5, %v853
        %v855 = vrot.slane %v531, %v854
        %v856 = vmul.f32 %v730, %v855
        %v857 = vmul.f32 %v729, %v855
        %v858 = vmul.f32 %v728, %v855
        %v859 = vmul.f32 %v727, %v855
        %v860 = vmul.f32 %v726, %v855
        %v861 = vmul.f32 %v725, %v855
        %v862 = vmul.f32 %v724, %v855
        %v863 = vmul.f32 %v731, %v855
        %864 = vset.pattern.permute.xlu0 5
        %865 = vperm.xlu0 %864, %v533
        %v866 = vpop.permute.xlu0 %865
        %868 = vset.pattern.permute.xlu0 5
        %869 = vperm.xlu0 %868, %v534
        %v870 = vpop.permute.xlu0 %869
        %872 = vset.pattern.permute.xlu0 5
        %873 = vperm.xlu0 %872, %v535
        %v874 = vpop.permute.xlu0 %873
        %876 = vset.pattern.permute.xlu0 5
        %877 = vperm.xlu0 %876, %v536
        %v878 = vpop.permute.xlu0 %877
        %880 = vset.pattern.permute.xlu0 5
        %881 = vperm.xlu0 %880, %v537
        %v882 = vpop.permute.xlu0 %881
        %884 = vset.pattern.permute.xlu0 5
        %885 = vperm.xlu0 %884, %v538
        %v886 = vpop.permute.xlu0 %885
        %888 = vset.pattern.permute.xlu0 5
        %889 = vperm.xlu0 %888, %v539
        %v890 = vpop.permute.xlu0 %889
        %892 = vset.pattern.permute.xlu0 5
        %893 = vperm.xlu0 %892, %v540
        %v894 = vpop.permute.xlu0 %893
        %v896 = vmul.f32 %v856, %v866
        %v897 = vmul.f32 %v857, %v870
        %v898 = vmul.f32 %v858, %v874
        %v899 = vmul.f32 %v859, %v878
        %v900 = vmul.f32 %v860, %v882
        %v901 = vmul.f32 %v861, %v886
        %v902 = vmul.f32 %v862, %v890
        %v903 = vmul.f32 %v863, %v894
        %v904 = vadd.f32 %v844, %v896
        %v905 = vadd.f32 %v845, %v897
        %v906 = vadd.f32 %v846, %v898
        %v907 = vadd.f32 %v847, %v899
        %v908 = vadd.f32 %v848, %v900
        %v909 = vadd.f32 %v849, %v901
        %v910 = vadd.f32 %v850, %v902
        %v911 = vadd.f32 %v851, %v903
        %v912 = vlaneseq
        %v913 = vshrl.u32 %v912, 7
        %v914 = vsub.s32 6, %v913
        %v915 = vrot.slane %v531, %v914
        %v916 = vmul.f32 %v585, %v915
        %v917 = vmul.f32 %v584, %v915
        %v918 = vmul.f32 %v583, %v915
        %v919 = vmul.f32 %v582, %v915
        %v920 = vmul.f32 %v581, %v915
        %v921 = vmul.f32 %v580, %v915
        %v922 = vmul.f32 %v579, %v915
        %v923 = vmul.f32 %v586, %v915
        %924 = vset.pattern.permute.xlu0 6
        %925 = vperm.xlu0 %924, %v533
        %v926 = vpop.permute.xlu0 %925
        %928 = vset.pattern.permute.xlu0 6
        %929 = vperm.xlu0 %928, %v534
        %v930 = vpop.permute.xlu0 %929
        %932 = vset.pattern.permute.xlu0 6
        %933 = vperm.xlu0 %932, %v535
        %v934 = vpop.permute.xlu0 %933
        %936 = vset.pattern.permute.xlu0 6
        %937 = vperm.xlu0 %936, %v536
        %v938 = vpop.permute.xlu0 %937
        %940 = vset.pattern.permute.xlu0 6
        %941 = vperm.xlu0 %940, %v537
        %v942 = vpop.permute.xlu0 %941
        %944 = vset.pattern.permute.xlu0 6
        %945 = vperm.xlu0 %944, %v538
        %v946 = vpop.permute.xlu0 %945
        %948 = vset.pattern.permute.xlu0 6
        %949 = vperm.xlu0 %948, %v539
        %v950 = vpop.permute.xlu0 %949
        %952 = vset.pattern.permute.xlu0 6
        %953 = vperm.xlu0 %952, %v540
        %v954 = vpop.permute.xlu0 %953
        %v956 = vmul.f32 %v916, %v926
        %v957 = vmul.f32 %v917, %v930
        %v958 = vmul.f32 %v918, %v934
        %v959 = vmul.f32 %v919, %v938
        %v960 = vmul.f32 %v920, %v942
        %v961 = vmul.f32 %v921, %v946
        %v962 = vmul.f32 %v922, %v950
        %v963 = vmul.f32 %v923, %v954
        %v964 = vadd.f32 %v904, %v956
        %v965 = vadd.f32 %v905, %v957
        %v966 = vadd.f32 %v906, %v958
        %v967 = vadd.f32 %v907, %v959
        %v968 = vadd.f32 %v908, %v960
        %v969 = vadd.f32 %v909, %v961
        %v970 = vadd.f32 %v910, %v962
        %v971 = vadd.f32 %v911, %v963
        %v972 = vlaneseq
        %v973 = vshrl.u32 %v972, 7
        %v974 = vsub.s32 7, %v973
        %v975 = vrot.slane %v531, %v974
        %v976 = vmul.f32 %v524, %v975
        %v977 = vmul.f32 %v525, %v975
        %v978 = vmul.f32 %v526, %v975
        %v979 = vmul.f32 %v527, %v975
        %v980 = vmul.f32 %v528, %v975
        %v981 = vmul.f32 %v529, %v975
        %v982 = vmul.f32 %v530, %v975
        %v983 = vmul.f32 %v523, %v975
        %984 = vset.pattern.permute.xlu0 7
        %985 = vperm.xlu0 %984, %v533
        %v986 = vpop.permute.xlu0 %985
        %988 = vset.pattern.permute.xlu0 7
        %989 = vperm.xlu0 %988, %v534
        %v990 = vpop.permute.xlu0 %989
        %992 = vset.pattern.permute.xlu0 7
        %993 = vperm.xlu0 %992, %v535
        %v994 = vpop.permute.xlu0 %993
        %996 = vset.pattern.permute.xlu0 7
        %997 = vperm.xlu0 %996, %v536
        %v998 = vpop.permute.xlu0 %997
        %1000 = vset.pattern.permute.xlu0 7
        %1001 = vperm.xlu0 %1000, %v537
        %v1002 = vpop.permute.xlu0 %1001
        %1004 = vset.pattern.permute.xlu0 7
        %1005 = vperm.xlu0 %1004, %v538
        %v1006 = vpop.permute.xlu0 %1005
        %1008 = vset.pattern.permute.xlu0 7
        %1009 = vperm.xlu0 %1008, %v539
        %v1010 = vpop.permute.xlu0 %1009
        %1012 = vset.pattern.permute.xlu0 7
        %1013 = vperm.xlu0 %1012, %v540
        %v1014 = vpop.permute.xlu0 %1013
        %v1016 = vmul.f32 %v976, %v986
        %v1017 = vmul.f32 %v977, %v990
        %v1018 = vmul.f32 %v978, %v994
        %v1019 = vmul.f32 %v979, %v998
        %v1020 = vmul.f32 %v980, %v1002
        %v1021 = vmul.f32 %v981, %v1006
        %v1022 = vmul.f32 %v982, %v1010
        %v1023 = vmul.f32 %v983, %v1014
        %v1024 = vadd.f32 %v964, %v1016
        %v1025 = vadd.f32 %v965, %v1017
        %v1026 = vadd.f32 %v966, %v1018
        %v1027 = vadd.f32 %v967, %v1019
        %v1028 = vadd.f32 %v968, %v1020
        %v1029 = vadd.f32 %v969, %v1021
        %v1030 = vadd.f32 %v970, %v1022
        %v1031 = vadd.f32 %v971, %v1023
        %v1032 = vlaneseq
        %v1033 = vshrl.u32 %v1032, 7
        %v1034 = vsub.s32 0, %v1033
        %v1035 = vrot.slane %v532, %v1034
        %v1036 = vmul.f32 %v729, %v1035
        %v1037 = vmul.f32 %v728, %v1035
        %v1038 = vmul.f32 %v727, %v1035
        %v1039 = vmul.f32 %v726, %v1035
        %v1040 = vmul.f32 %v725, %v1035
        %v1041 = vmul.f32 %v724, %v1035
        %v1042 = vmul.f32 %v731, %v1035
        %v1043 = vmul.f32 %v730, %v1035
        %1044 = vset.pattern.permute.xlu0 8
        %1045 = vperm.xlu0 %1044, %v533
        %v1046 = vpop.permute.xlu0 %1045
        %1048 = vset.pattern.permute.xlu0 8
        %1049 = vperm.xlu0 %1048, %v534
        %v1050 = vpop.permute.xlu0 %1049
        %1052 = vset.pattern.permute.xlu0 8
        %1053 = vperm.xlu0 %1052, %v535
        %v1054 = vpop.permute.xlu0 %1053
        %1056 = vset.pattern.permute.xlu0 8
        %1057 = vperm.xlu0 %1056, %v536
        %v1058 = vpop.permute.xlu0 %1057
        %1060 = vset.pattern.permute.xlu0 8
        %1061 = vperm.xlu0 %1060, %v537
        %v1062 = vpop.permute.xlu0 %1061
        %1064 = vset.pattern.permute.xlu0 8
        %1065 = vperm.xlu0 %1064, %v538
        %v1066 = vpop.permute.xlu0 %1065
        %1068 = vset.pattern.permute.xlu0 8
        %1069 = vperm.xlu0 %1068, %v539
        %v1070 = vpop.permute.xlu0 %1069
        %1072 = vset.pattern.permute.xlu0 8
        %1073 = vperm.xlu0 %1072, %v540
        %v1074 = vpop.permute.xlu0 %1073
        %v1076 = vmul.f32 %v1036, %v1046
        %v1077 = vmul.f32 %v1037, %v1050
        %v1078 = vmul.f32 %v1038, %v1054
        %v1079 = vmul.f32 %v1039, %v1058
        %v1080 = vmul.f32 %v1040, %v1062
        %v1081 = vmul.f32 %v1041, %v1066
        %v1082 = vmul.f32 %v1042, %v1070
        %v1083 = vmul.f32 %v1043, %v1074
        %v1084 = vadd.f32 %v1024, %v1076
        %v1085 = vadd.f32 %v1025, %v1077
        %v1086 = vadd.f32 %v1026, %v1078
        %v1087 = vadd.f32 %v1027, %v1079
        %v1088 = vadd.f32 %v1028, %v1080
        %v1089 = vadd.f32 %v1029, %v1081
        %v1090 = vadd.f32 %v1030, %v1082
        %v1091 = vadd.f32 %v1031, %v1083
        %v1092 = vadd.f32 %v1084, 3.0
        %v1093 = vadd.f32 %v1085, 3.0
        %v1094 = vadd.f32 %v1086, 3.0
        %v1095 = vadd.f32 %v1087, 3.0
        %v1096 = vadd.f32 %v1088, 3.0
        %v1097 = vadd.f32 %v1089, 3.0
        %v1098 = vadd.f32 %v1090, 3.0
        %v1099 = vadd.f32 %v1091, 3.0
        %v1100 = vmax.f32 %v1092, 0.0
        %v1101 = vmax.f32 %v1093, 0.0
        %v1102 = vmax.f32 %v1094, 0.0
        %v1103 = vmax.f32 %v1095, 0.0
        %v1104 = vmax.f32 %v1096, 0.0
        %v1105 = vmax.f32 %v1097, 0.0
        %v1106 = vmax.f32 %v1098, 0.0
        %v1107 = vmax.f32 %v1099, 0.0
        %v1108 = vmin.f32 %v1100, 6.0
        %v1109 = vmin.f32 %v1101, 6.0
        %v1110 = vmin.f32 %v1102, 6.0
        %v1111 = vmin.f32 %v1103, 6.0
        %v1112 = vmin.f32 %v1104, 6.0
        %v1113 = vmin.f32 %v1105, 6.0
        %v1114 = vmin.f32 %v1106, 6.0
        %v1115 = vmin.f32 %v1107, 6.0
        %v1116 = vmul.f32 %v1084, %v1108
        %v1117 = vmul.f32 %v1085, %v1109
        %v1118 = vmul.f32 %v1086, %v1110
        %v1119 = vmul.f32 %v1087, %v1111
        %v1120 = vmul.f32 %v1088, %v1112
        %v1121 = vmul.f32 %v1089, %v1113
        %v1122 = vmul.f32 %v1090, %v1114
        %v1123 = vmul.f32 %v1091, %v1115
        %v1124 = vmul.f32 %v1116, 0.16666667
        %v1125 = vmul.f32 %v1117, 0.16666667
        %v1126 = vmul.f32 %v1118, 0.16666667
        %v1127 = vmul.f32 %v1119, 0.16666667
        %v1128 = vmul.f32 %v1120, 0.16666667
        %v1129 = vmul.f32 %v1121, 0.16666667
        %v1130 = vmul.f32 %v1122, 0.16666667
        %v1131 = vmul.f32 %v1123, 0.16666667
        %v1132 = vld [vmem:[#allocation7] sm:$0xff]
        %v1133 = vld [vmem:[#allocation7 + $0x8] sm:$0xff]
        %v1134 = vld [vmem:[#allocation7 + $0x10] sm:$0xff]
        %v1135 = vld [vmem:[#allocation7 + $0x18] sm:$0xff]
        %v1136 = vld [vmem:[#allocation7 + $0x20] sm:$0xff]
        %v1137 = vld [vmem:[#allocation7 + $0x28] sm:$0xff]
        %v1138 = vld [vmem:[#allocation7 + $0x30] sm:$0xff]
        %v1139 = vld [vmem:[#allocation7 + $0x38] sm:$0xff]
        %v1140 = vld [vmem:[#allocation7 + $0x40] sm:$0xff]
        %v1141 = vld [vmem:[#allocation7 + $0x48] sm:$0xff]
        %v1142 = vld [vmem:[#allocation7 + $0x50] sm:$0xff]
        %v1143 = vld [vmem:[#allocation7 + $0x58] sm:$0xff]
        %v1144 = vld [vmem:[#allocation7 + $0x60] sm:$0xff]
        %v1145 = vld [vmem:[#allocation7 + $0x68] sm:$0xff]
        %v1146 = vld [vmem:[#allocation7 + $0x70] sm:$0xff]
        %v1147 = vld [vmem:[#allocation7 + $0x78] sm:$0xff]
        %v1148 = vld [vmem:[%s7] sm:$0x1]
        %v1150 = vlaneseq
        %v1151 = vshrl.u32 %v1150, 7
        %v1152 = vsub.s32 0, %v1151
        %v1153 = vrot.slane %v1148, %v1152
        %1155 = vmatprep.subr.mxu0 0.0
        %1156 = vmatpush1.msra.mxu0 %v1132
        %1157 = vmatprep.subr.mxu0 0.0
        %1158 = vmatpush1.msra.mxu0 %v1133
        %1159 = vmatprep.subr.mxu0 0.0
        %1160 = vmatpush1.msra.mxu0 %v1134
        %1161 = vmatprep.subr.mxu0 0.0
        %1162 = vmatpush1.msra.mxu0 %v1135
        %1163 = vmatprep.subr.mxu0 0.0
        %1164 = vmatpush1.msra.mxu0 %v1136
        %1165 = vmatprep.subr.mxu0 0.0
        %1166 = vmatpush1.msra.mxu0 %v1137
        %1167 = vmatprep.subr.mxu0 0.0
        %1168 = vmatpush1.msra.mxu0 %v1138
        %1169 = vmatprep.subr.mxu0 0.0
        %1170 = vmatpush1.msra.mxu0 %v1139
        %1171 = vmatprep.subr.mxu0 0.0
        %1172 = vmatpush1.msra.mxu0 %v1140
        %1173 = vmatprep.subr.mxu0 0.0
        %1174 = vmatpush1.msra.mxu0 %v1141
        %1175 = vmatprep.subr.mxu0 0.0
        %1176 = vmatpush1.msra.mxu0 %v1142
        %1177 = vmatprep.subr.mxu0 0.0
        %1178 = vmatpush1.msra.mxu0 %v1143
        %1179 = vmatprep.subr.mxu0 0.0
        %1180 = vmatpush1.msra.mxu0 %v1144
        %1181 = vmatprep.subr.mxu0 0.0
        %1182 = vmatpush1.msra.mxu0 %v1145
        %1183 = vmatprep.subr.mxu0 0.0
        %1184 = vmatpush1.msra.mxu0 %v1146
        %1185 = vmatprep.subr.mxu0 0.0
        %1186 = vmatpush1.msra.mxu0 %v1147
        %1187 = vmatprep.subr.mxu0 0.0
        %1188 = vmatpush1.msra.mxu0 0.0
        %1189 = vmatprep.subr.mxu0 0.0
        %1190 = vmatpush1.msra.mxu0 0.0
        %1191 = vmatprep.subr.mxu0 0.0
        %1192 = vmatpush1.msra.mxu0 0.0
        %1193 = vmatprep.subr.mxu0 0.0
        %1194 = vmatpush1.msra.mxu0 0.0
        %1195 = vmatprep.subr.mxu0 0.0
        %1196 = vmatpush1.msra.mxu0 0.0
        %1197 = vmatprep.subr.mxu0 0.0
        %1198 = vmatpush1.msra.mxu0 0.0
        %1199 = vmatprep.subr.mxu0 0.0
        %1200 = vmatpush1.msra.mxu0 0.0
        %1201 = vmatprep.subr.mxu0 0.0
        %1202 = vmatpush1.msra.mxu0 0.0
        %1203 = vmatprep.subr.mxu0 0.0
        %1204 = vmatpush1.msra.mxu0 0.0
        %1205 = vmatprep.subr.mxu0 0.0
        %1206 = vmatpush1.msra.mxu0 0.0
        %1207 = vmatprep.subr.mxu0 0.0
        %1208 = vmatpush1.msra.mxu0 0.0
        %1209 = vmatprep.subr.mxu0 0.0
        %1210 = vmatpush1.msra.mxu0 0.0
        %1211 = vmatprep.subr.mxu0 0.0
        %1212 = vmatpush1.msra.mxu0 0.0
        %1213 = vmatprep.subr.mxu0 0.0
        %1214 = vmatpush1.msra.mxu0 0.0
        %1215 = vmatprep.subr.mxu0 0.0
        %1216 = vmatpush1.msra.mxu0 0.0
        %1217 = vmatprep.subr.mxu0 0.0
        %1218 = vmatpush1.msra.mxu0 0.0
        %1219 = vmatprep.mubr.f32.mxu0 0.0
        %1220 = vmatmul.mubr.f32.gmra.mrb[0].mxu0 %v1124
        %v1221 = vpop.f32.mrb[0].mxu0
        %v1222 = vadd.f32 %v1153, %v1221
        %v1223 = vpop.f32.mrb[0].mxu0
        %1224 = vmatprep.mubr.f32.mxu0 0.0
        %1225 = vmatmul.mubr.f32.gmra.mrb[0].mxu0 %v1125
        %v1226 = vpop.f32.mrb[0].mxu0
        %v1227 = vadd.f32 %v1153, %v1226
        %v1228 = vpop.f32.mrb[0].mxu0
        %1229 = vmatprep.mubr.f32.mxu0 0.0
        %1230 = vmatmul.mubr.f32.gmra.mrb[0].mxu0 %v1126
        %v1231 = vpop.f32.mrb[0].mxu0
        %v1232 = vadd.f32 %v1153, %v1231
        %v1233 = vpop.f32.mrb[0].mxu0
        %1234 = vmatprep.mubr.f32.mxu0 0.0
        %1235 = vmatmul.mubr.f32.gmra.mrb[0].mxu0 %v1127
        %v1236 = vpop.f32.mrb[0].mxu0
        %v1237 = vadd.f32 %v1153, %v1236
        %v1238 = vpop.f32.mrb[0].mxu0
        %1239 = vmatprep.mubr.f32.mxu0 0.0
        %1240 = vmatmul.mubr.f32.gmra.mrb[0].mxu0 %v1128
        %v1241 = vpop.f32.mrb[0].mxu0
        %v1242 = vadd.f32 %v1153, %v1241
        %v1243 = vpop.f32.mrb[0].mxu0
        %1244 = vmatprep.mubr.f32.mxu0 0.0
        %1245 = vmatmul.mubr.f32.gmra.mrb[0].mxu0 %v1129
        %v1246 = vpop.f32.mrb[0].mxu0
        %v1247 = vadd.f32 %v1153, %v1246
        %v1248 = vpop.f32.mrb[0].mxu0
        %1249 = vmatprep.mubr.f32.mxu0 0.0
        %1250 = vmatmul.mubr.f32.gmra.mrb[0].mxu0 %v1130
        %v1251 = vpop.f32.mrb[0].mxu0
        %v1252 = vadd.f32 %v1153, %v1251
        %v1253 = vpop.f32.mrb[0].mxu0
        %1254 = vmatprep.mubr.f32.mxu0 0.0
        %1255 = vmatmul.mubr.f32.gmra.mrb[0].mxu0 %v1131
        %v1256 = vpop.f32.mrb[0].mxu0
        %v1257 = vadd.f32 %v1153, %v1256
        %v1258 = vpop.f32.mrb[0].mxu0
        %1259 = vdwg.mxu0
        %v1260 = vadd.f32 %v355, %v1222
        %v1261 = vadd.f32 %v356, %v1227
        %v1262 = vadd.f32 %v357, %v1232
        %v1263 = vadd.f32 %v358, %v1237
        %v1264 = vadd.f32 %v359, %v1242
        %v1265 = vadd.f32 %v360, %v1247
        %v1266 = vadd.f32 %v361, %v1252
        %v1267 = vadd.f32 %v362, %v1257
        %1268 = vst [vmem:[%s352] sm:$0xff] %v1260
        %1269 = vst [vmem:[%s352 + $0x8] sm:$0xff] %v1261
        %1270 = vst [vmem:[%s352 + $0x10] sm:$0xff] %v1262
        %1271 = vst [vmem:[%s352 + $0x18] sm:$0xff] %v1263
        %1272 = vst [vmem:[%s352 + $0x20] sm:$0xff] %v1264
        %1273 = vst [vmem:[%s352 + $0x28] sm:$0xff] %v1265
        %1274 = vst [vmem:[%s352 + $0x30] sm:$0xff] %v1266
        %1275 = vst [vmem:[%s352 + $0x38] sm:$0xff] %v1267
        %s1276 = sand.u32 %s207, 1
        %s1277 = scalar_lea.sflag [#allocation4], %s1276
        %s1278 = sand.u32 %s207, 1
        %s1279 = smul.addr %s1278, 64
        %s1280 = scalar_lea.vmem [#allocation8], %s1279
        // Predicated region
        $region65: #{tpu_custom_call.1} parent=51 // pred_check
          %p1281 = pneg %p217
        $region66: #{tpu_custom_call.1} parent=51 // pred_check_branch
          %1283 = sbr.rel (%p1281) target = $region68
        $region67: #{tpu_custom_call.1} parent=51 // pred_region
          %s1284 = smul.u32 8, %s26
          %s1286 = ssub.s32 1024, 1024
          %1287 = vsyncadd %s1277, %s1286
          %s1288 = smul.addr %s1284, 128
          %s1289 = scalar_lea.hbm %s8, %s1288
          %s1290 = sshll.u32 %s1280, 4
          %s1291 = int_to_ptr.vmem [resolvable:$true] %s1290
          %1296 = dma.vmem_to_hbm [thread:$0]  %s1291, 1024, %s1289, %s1277, 128, 128, 8
        $region68: #{tpu_custom_call.1} parent=51 // pred_fallthru
          _
      $region52: #{tpu_custom_call.1} parent=5 // pred_fallthru
        _
      %p1297 = scmp.le.s32.totalorder 2, %s21
      // Predicated region
      $region69: #{tpu_custom_call.1} parent=5 // pred_check
        %p1298 = pneg %p1297
      $region70: #{tpu_custom_call.1} parent=5 // pred_check_branch
        %1300 = sbr.rel (%p1298) target = $region72
      $region71: #{tpu_custom_call.1} parent=5 // pred_region
        %s1301 = ssub.s32 %s21, 2
        // Predicated region
        $region73: #{tpu_custom_call.1} parent=71 // pred_check
          %p1302 = pneg %p223
        $region74: #{tpu_custom_call.1} parent=71 // pred_check_branch
          %1304 = sbr.rel (%p1302) target = $region76
        $region75: #{tpu_custom_call.1} parent=71 // pred_region
          %s1305 = sand.u32 %s208, 1
          %s1306 = scalar_lea.sflag [#allocation4], %s1305
          %s1307 = sand.u32 %s208, 1
          %s1308 = smul.addr %s1307, 64
          %s1309 = scalar_lea.vmem [#allocation8], %s1308
          %1310 = dma.done %s1306, 1024
        $region76: #{tpu_custom_call.1} parent=71 // pred_fallthru
          _
      $region72: #{tpu_custom_call.1} parent=5 // pred_fallthru
        _
    $region6: #{tpu_custom_call.1} parent=1 // loop_footer
      %s25 = sadd.s32 1, %s21
    $region7: #{tpu_custom_call.1} parent=1 // loop_footer_branch
      %20 = sbr.rel target = $region3
    $region8: #{tpu_custom_call.1} parent=1 // loop_exit
      _
    %1311 = vsyncpa [#allocation3], 1
    %s1312 = scalar_lea.sflag [#allocation3], 1
    %1313 = vsyncpa %s1312, 1
    %1314 = vsyncpa [#allocation6], 1
    %1315 = vsyncpa [#allocation4], 1
    %s1316 = scalar_lea.sflag [#allocation4], 1
    %1317 = vsyncpa %s1316, 1

</llo_original>
